<compile_context>
chip_gen: v6e
topology: v6e:2x2x1
jax: 0.10.0
libtpu: 0.0.40
codegen_flags: <defaults>
</compile_context>

<pallas_src>
import functools

import jax
import jax.numpy as jnp
from jax.experimental import pallas as pl
from jax.experimental.pallas import tpu as pltpu

EPS = 1e-5


def _roll(x, shift, size):
    """result[:, k] = x[:, (k - shift) % size]; shift is a static int in [1, size).

    Explicit slice+concat (unambiguous semantics); Mosaic lowers it to a lane
    rotate/realign.  Could be swapped for pltpu.roll at large shapes.
    """
    return jnp.concatenate([x[:, size - shift:], x[:, :size - shift]], axis=1)


def residual_block_kernel(x_ref, w1_ref, g1_ref, bt1_ref, w2_ref, g2_ref,
                          bt2_ref, o_ref, col_ref, *, C, H, W):
    HW = H * W
    inv_hw = 1.0 / float(HW)
    x = x_ref[0].astype(jnp.float32)                       # (C, HW), lane-dense

    # Reflection-boundary masks on the flat spatial axis (computed once, reused
    # by both stages).
    lane = jax.lax.broadcasted_iota(jnp.int32, (1, HW), 1)
    cidx = lane % W
    first_col = cidx == 0
    last_col = cidx == W - 1
    first_row = lane < W
    last_row = lane >= (H - 1) * W

    def build_im2col(img):
        """Fill col_ref (9C, HW): block t=kh*3+kw holds the tap-(kh,kw) shifted image."""
        up = _roll(img, W, HW)                 # up[k]   = img[k - W]  (source row i-1)
        down = _roll(img, HW - W, HW)          # down[k] = img[k + W]  (source row i+1)
        rows = (jnp.where(first_row, down, up),    # kh=0: row i-1, reflect top -> row 1
                img,                               # kh=1
                jnp.where(last_row, up, down))     # kh=2: row i+1, reflect bot -> row H-2
        for kh in range(3):
            r = rows[kh]
            left = _roll(r, 1, HW)             # left[k]  = r[k - 1]  (source col j-1)
            right = _roll(r, HW - 1, HW)       # right[k] = r[k + 1]  (source col j+1)
            cols = (jnp.where(first_col, right, left),  # kw=0: col j-1, reflect -> col 1
                    r,                                   # kw=1
                    jnp.where(last_col, left, right))    # kw=2: col j+1, reflect -> col W-2
            for kw in range(3):
                t = kh * 3 + kw
                col_ref[t * C:(t + 1) * C, :] = cols[kw]

    def conv_instnorm(w_ref, g_ref, b_ref):
        # Single MXU contraction: (C, 9C) @ (9C, HW).  Conv bias omitted (cancels
        # under the IN mean subtraction).
        acc = jnp.dot(w_ref[...], col_ref[...],
                      preferred_element_type=jnp.float32,
                      precision=jax.lax.Precision.HIGHEST)
        mean = jnp.sum(acc, axis=1, keepdims=True) * inv_hw
        ex2 = jnp.sum(acc * acc, axis=1, keepdims=True) * inv_hw
        var = ex2 - mean * mean                # biased var (PyTorch InstanceNorm)
        scale = g_ref[...] * jax.lax.rsqrt(var + EPS)
        shift = b_ref[...] - mean * scale      # fold affine: y = acc*scale + shift
        return acc * scale + shift

    # ---- stage 1: relu(in1(conv1(reflect_pad(x)))) ----
    build_im2col(x)
    y1 = jnp.maximum(conv_instnorm(w1_ref, g1_ref, bt1_ref), 0.0)

    # ---- stage 2: relu(in2(conv2(reflect_pad(y1))) + x) ----
    build_im2col(y1)
    y2 = conv_instnorm(w2_ref, g2_ref, bt2_ref)
    o_ref[0] = jnp.maximum(y2 + x, 0.0).astype(o_ref.dtype)


@jax.jit
def residual_block(x, params):
    N, C, H, W = x.shape
    HW = H * W
    w1, b1, g1, bt1, w2, b2, g2, bt2 = params
    del b1, b2  # per-channel bias before InstanceNorm is a mathematical no-op

    # (Cout, Cin, 3, 3) -> (Cout, 9*Cin); column index = (kh*3 + kw)*Cin + ci,
    # matching the im2col row-block order in the kernel.
    mat = lambda w: jnp.transpose(w, (0, 2, 3, 1)).reshape(C, 9 * C).astype(jnp.float32)
    col = lambda v: v.reshape(C, 1).astype(jnp.float32)
    x_flat = x.reshape(N, C, HW)                        # lane-dense activations

    def full(shape):
        return pl.BlockSpec(shape, lambda n, _s=shape: (0,) * len(_s))

    # Raise the scoped VMEM limit when the per-image working set needs it
    # (v5e/v6e have 128 MiB physical; keeps the fully fused structure).
    est = 4 * (2 * 2 * C * HW          # x + out blocks, double-buffered
               + 2 * 2 * C * 9 * C     # two (C, 9C) weight mats, double-buffered
               + 9 * C * HW            # im2col scratch
               + 8 * C * HW)           # activation temps (rough)
    vmem_limit = int(min(max(32 << 20, 2 * est), 100 << 20))

    out = pl.pallas_call(
        functools.partial(residual_block_kernel, C=C, H=H, W=W),
        out_shape=jax.ShapeDtypeStruct((N, C, HW), x.dtype),
        grid=(N,),
        in_specs=[pl.BlockSpec((1, C, HW), lambda n: (n, 0, 0)),
                  full((C, 9 * C)), full((C, 1)), full((C, 1)),
                  full((C, 9 * C)), full((C, 1)), full((C, 1))],
        out_specs=pl.BlockSpec((1, C, HW), lambda n: (n, 0, 0)),
        scratch_shapes=[pltpu.VMEM((9 * C, HW), jnp.float32)],   # im2col slab
        compiler_params=pltpu.CompilerParams(
            dimension_semantics=("parallel",),
            vmem_limit_bytes=vmem_limit),
    )(x_flat, mat(w1), col(g1), col(bt1), mat(w2), col(g2), col(bt2))
    return out.reshape(N, C, H, W)


# ----------------------------- reference & test -----------------------------

def _reflect_pad(x):
    return jnp.pad(x, ((0, 0), (0, 0), (1, 1), (1, 1)), mode="reflect")


def _ref_forward(x, params):
    """Pure-JAX reference mirroring the PyTorch module, for verification."""
    w1, b1, g1, bt1, w2, b2, g2, bt2 = params

    def conv(xp, w, b):
        y = jax.lax.conv_general_dilated(
            xp, w, window_strides=(1, 1), padding="VALID",
            dimension_numbers=("NCHW", "OIHW", "NCHW"))
        return y + b[None, :, None, None]

    def inorm(y, g, bt):
        m = jnp.mean(y, axis=(2, 3), keepdims=True)
        v = jnp.mean((y - m) ** 2, axis=(2, 3), keepdims=True)
        return ((y - m) * jax.lax.rsqrt(v + EPS)
                * g[None, :, None, None] + bt[None, :, None, None])

    out = jax.nn.relu(inorm(conv(_reflect_pad(x), w1, b1), g1, bt1))
    out = inorm(conv(_reflect_pad(out), w2, b2), g2, bt2) + x
    return jax.nn.relu(out)


if __name__ == "__main__":
    N, C, H, W = 2, 4, 16, 16
    key = jax.random.PRNGKey(0)
    ks = jax.random.split(key, 5)
    x = jax.random.normal(ks[0], (N, C, H, W), jnp.float32)

    # Deterministic parameter init (Conv2d-style uniform; IN affine: weight=1, bias=0).
    scale = 1.0 / (C * 3 * 3) ** 0.5
    w1 = jax.random.uniform(ks[1], (C, C, 3, 3), jnp.float32, -scale, scale)
    b1 = jax.random.uniform(ks[2], (C,), jnp.float32, -scale, scale)
    w2 = jax.random.uniform(ks[3], (C, C, 3, 3), jnp.float32, -scale, scale)
    b2 = jax.random.uniform(ks[4], (C,), jnp.float32, -scale, scale)
    g1 = jnp.ones((C,), jnp.float32)
    bt1 = jnp.zeros((C,), jnp.float32)
    g2 = jnp.ones((C,), jnp.float32)
    bt2 = jnp.zeros((C,), jnp.float32)
    params = (w1, b1, g1, bt1, w2, b2, g2, bt2)

    out = jax.block_until_ready(residual_block(x, params))
    ref = _ref_forward(x, params)
    assert out.shape == (N, C, H, W)
    max_err = float(jnp.max(jnp.abs(out - ref)))
    assert jnp.allclose(out, ref, atol=1e-4, rtol=1e-4), max_err
    print("KERNEL_OK")
</pallas_src>

<mosaic_0001>
module attributes {stable_mosaic.version = 11 : i64} {
  func.func @residual_block_kernel(%arg0: i32, %arg1: memref<1x4x256xf32, #tpu.memory_space<vmem>>, %arg2: memref<4x36xf32, #tpu.memory_space<vmem>>, %arg3: memref<4x1xf32, #tpu.memory_space<vmem>>, %arg4: memref<4x1xf32, #tpu.memory_space<vmem>>, %arg5: memref<4x36xf32, #tpu.memory_space<vmem>>, %arg6: memref<4x1xf32, #tpu.memory_space<vmem>>, %arg7: memref<4x1xf32, #tpu.memory_space<vmem>>, %arg8: memref<1x4x256xf32, #tpu.memory_space<vmem>>, %arg9: memref<36x256xf32, #tpu.memory_space<vmem>>) attributes {dimension_semantics = [#tpu.dimension_semantics<parallel>], iteration_bounds = array<i64: 2>, scalar_prefetch = 0 : i64, scratch_operands = 1 : i64, tpu.core_type = #tpu.core_type<tc>, window_params = [{transform_indices = @transform_0, window_bounds = array<i64: 1, 4, 256>}, {pipeline_mode = #tpu.pipeline_mode<synchronous>, transform_indices = @transform_1, window_bounds = array<i64: 4, 36>}, {pipeline_mode = #tpu.pipeline_mode<synchronous>, transform_indices = @transform_2, window_bounds = array<i64: 4, 1>}, {pipeline_mode = #tpu.pipeline_mode<synchronous>, transform_indices = @transform_3, window_bounds = array<i64: 4, 1>}, {pipeline_mode = #tpu.pipeline_mode<synchronous>, transform_indices = @transform_4, window_bounds = array<i64: 4, 36>}, {pipeline_mode = #tpu.pipeline_mode<synchronous>, transform_indices = @transform_5, window_bounds = array<i64: 4, 1>}, {pipeline_mode = #tpu.pipeline_mode<synchronous>, transform_indices = @transform_6, window_bounds = array<i64: 4, 1>}, {transform_indices = @transform_7, window_bounds = array<i64: 1, 4, 256>}]} {
    %c0 = arith.constant 0 : index
    %c0_0 = arith.constant 0 : index
    %c0_1 = arith.constant 0 : index
    %0 = vector.load %arg1[%c0, %c0_0, %c0_1] : memref<1x4x256xf32, #tpu.memory_space<vmem>>, vector<1x4x256xf32>
    %1 = vector.shape_cast %0 : vector<1x4x256xf32> to vector<4x256xf32>
    %2 = tpu.iota {dimensions = array<i32: 1>} : vector<1x256xi32>
    %c16_i32 = arith.constant 16 : i32
    %c0_i32 = arith.constant 0 : i32
    %3 = arith.cmpi eq, %c16_i32, %c0_i32 : i32
    %c1_i32 = arith.constant 1 : i32
    %4 = arith.select %3, %c1_i32, %c16_i32 : i32
    %5 = vector.broadcast %4 : i32 to vector<1x256xi32>
    %6 = arith.remsi %2, %5 : vector<1x256xi32>
    %c0_i32_2 = arith.constant 0 : i32
    %7 = vector.broadcast %c0_i32_2 : i32 to vector<1x256xi32>
    %8 = arith.cmpi ne, %6, %7 : vector<1x256xi32>
    %c0_i32_3 = arith.constant 0 : i32
    %9 = vector.broadcast %c0_i32_3 : i32 to vector<1x256xi32>
    %10 = arith.cmpi slt, %6, %9 : vector<1x256xi32>
    %c0_i32_4 = arith.constant 0 : i32
    %11 = arith.cmpi slt, %4, %c0_i32_4 : i32
    %12 = vector.broadcast %11 : i1 to vector<1x256xi1>
    %13 = vector.broadcast %12 : vector<1x256xi1> to vector<1x256xi1>
    %14 = arith.xori %10, %13 : vector<1x256xi1>
    %15 = arith.andi %14, %8 : vector<1x256xi1>
    %16 = vector.broadcast %4 : i32 to vector<1x256xi32>
    %17 = arith.addi %6, %16 : vector<1x256xi32>
    %18 = arith.select %15, %17, %6 : vector<1x256xi1>, vector<1x256xi32>
    %c0_i32_5 = arith.constant 0 : i32
    %19 = vector.broadcast %c0_i32_5 : i32 to vector<1x256xi32>
    %20 = arith.cmpi eq, %18, %19 : vector<1x256xi32>
    %c15_i32 = arith.constant 15 : i32
    %21 = vector.broadcast %c15_i32 : i32 to vector<1x256xi32>
    %22 = arith.cmpi eq, %18, %21 : vector<1x256xi32>
    %c16_i32_6 = arith.constant 16 : i32
    %23 = vector.broadcast %c16_i32_6 : i32 to vector<1x256xi32>
    %24 = arith.cmpi slt, %2, %23 : vector<1x256xi32>
    %c240_i32 = arith.constant 240 : i32
    %25 = vector.broadcast %c240_i32 : i32 to vector<1x256xi32>
    %26 = arith.cmpi sge, %2, %25 : vector<1x256xi32>
    %27 = vector.extract_strided_slice %1 {offsets = [0, 240], sizes = [4, 16], strides = [1, 1]} : vector<4x256xf32> to vector<4x16xf32>
    %28 = vector.extract_strided_slice %1 {offsets = [0, 0], sizes = [4, 240], strides = [1, 1]} : vector<4x256xf32> to vector<4x240xf32>
    %29 = tpu.concatenate %27, %28 in 1 : vector<4x16xf32>, vector<4x240xf32> -> vector<4x256xf32>
    %30 = vector.extract_strided_slice %1 {offsets = [0, 16], sizes = [4, 240], strides = [1, 1]} : vector<4x256xf32> to vector<4x240xf32>
    %31 = vector.extract_strided_slice %1 {offsets = [0, 0], sizes = [4, 16], strides = [1, 1]} : vector<4x256xf32> to vector<4x16xf32>
    %32 = tpu.concatenate %30, %31 in 1 : vector<4x240xf32>, vector<4x16xf32> -> vector<4x256xf32>
    %33 = vector.shape_cast %24 : vector<1x256xi1> to vector<1x256xi1>
    %34 = vector.broadcast %33 : vector<1x256xi1> to vector<4x256xi1>
    %35 = arith.select %34, %32, %29 : vector<4x256xi1>, vector<4x256xf32>
    %36 = vector.shape_cast %26 : vector<1x256xi1> to vector<1x256xi1>
    %37 = vector.broadcast %36 : vector<1x256xi1> to vector<4x256xi1>
    %38 = arith.select %37, %29, %32 : vector<4x256xi1>, vector<4x256xf32>
    %39 = vector.extract_strided_slice %35 {offsets = [0, 255], sizes = [4, 1], strides = [1, 1]} : vector<4x256xf32> to vector<4x1xf32>
    %40 = vector.extract_strided_slice %35 {offsets = [0, 0], sizes = [4, 255], strides = [1, 1]} : vector<4x256xf32> to vector<4x255xf32>
    %41 = tpu.concatenate %39, %40 in 1 : vector<4x1xf32>, vector<4x255xf32> -> vector<4x256xf32>
    %42 = vector.extract_strided_slice %35 {offsets = [0, 1], sizes = [4, 255], strides = [1, 1]} : vector<4x256xf32> to vector<4x255xf32>
    %43 = vector.extract_strided_slice %35 {offsets = [0, 0], sizes = [4, 1], strides = [1, 1]} : vector<4x256xf32> to vector<4x1xf32>
    %44 = tpu.concatenate %42, %43 in 1 : vector<4x255xf32>, vector<4x1xf32> -> vector<4x256xf32>
    %45 = vector.shape_cast %20 : vector<1x256xi1> to vector<1x256xi1>
    %46 = vector.broadcast %45 : vector<1x256xi1> to vector<4x256xi1>
    %47 = arith.select %46, %44, %41 : vector<4x256xi1>, vector<4x256xf32>
    %48 = vector.shape_cast %22 : vector<1x256xi1> to vector<1x256xi1>
    %49 = vector.broadcast %48 : vector<1x256xi1> to vector<4x256xi1>
    %50 = arith.select %49, %41, %44 : vector<4x256xi1>, vector<4x256xf32>
    %c0_7 = arith.constant 0 : index
    %c0_8 = arith.constant 0 : index
    %51 = vector.load %arg9[%c0_7, %c0_8] : memref<36x256xf32, #tpu.memory_space<vmem>>, vector<4x256xf32>
    tpu.vector_store %arg9[%c0_7, %c0_8], %47 {strides = array<i32>} : memref<36x256xf32, #tpu.memory_space<vmem>>, vector<4x256xf32>,
    %c4 = arith.constant 4 : index
    %c0_9 = arith.constant 0 : index
    %52 = vector.load %arg9[%c4, %c0_9] : memref<36x256xf32, #tpu.memory_space<vmem>>, vector<4x256xf32>
    tpu.vector_store %arg9[%c4, %c0_9], %35 {strides = array<i32>} : memref<36x256xf32, #tpu.memory_space<vmem>>, vector<4x256xf32>,
    %c8 = arith.constant 8 : index
    %c0_10 = arith.constant 0 : index
    %53 = vector.load %arg9[%c8, %c0_10] : memref<36x256xf32, #tpu.memory_space<vmem>>, vector<4x256xf32>
    tpu.vector_store %arg9[%c8, %c0_10], %50 {strides = array<i32>} : memref<36x256xf32, #tpu.memory_space<vmem>>, vector<4x256xf32>,
    %54 = vector.extract_strided_slice %1 {offsets = [0, 255], sizes = [4, 1], strides = [1, 1]} : vector<4x256xf32> to vector<4x1xf32>
    %55 = vector.extract_strided_slice %1 {offsets = [0, 0], sizes = [4, 255], strides = [1, 1]} : vector<4x256xf32> to vector<4x255xf32>
    %56 = tpu.concatenate %54, %55 in 1 : vector<4x1xf32>, vector<4x255xf32> -> vector<4x256xf32>
    %57 = vector.extract_strided_slice %1 {offsets = [0, 1], sizes = [4, 255], strides = [1, 1]} : vector<4x256xf32> to vector<4x255xf32>
    %58 = vector.extract_strided_slice %1 {offsets = [0, 0], sizes = [4, 1], strides = [1, 1]} : vector<4x256xf32> to vector<4x1xf32>
    %59 = tpu.concatenate %57, %58 in 1 : vector<4x255xf32>, vector<4x1xf32> -> vector<4x256xf32>
    %60 = vector.shape_cast %20 : vector<1x256xi1> to vector<1x256xi1>
    %61 = vector.broadcast %60 : vector<1x256xi1> to vector<4x256xi1>
    %62 = arith.select %61, %59, %56 : vector<4x256xi1>, vector<4x256xf32>
    %63 = vector.shape_cast %22 : vector<1x256xi1> to vector<1x256xi1>
    %64 = vector.broadcast %63 : vector<1x256xi1> to vector<4x256xi1>
    %65 = arith.select %64, %56, %59 : vector<4x256xi1>, vector<4x256xf32>
    %c12 = arith.constant 12 : index
    %c0_11 = arith.constant 0 : index
    %66 = vector.load %arg9[%c12, %c0_11] : memref<36x256xf32, #tpu.memory_space<vmem>>, vector<4x256xf32>
    tpu.vector_store %arg9[%c12, %c0_11], %62 {strides = array<i32>} : memref<36x256xf32, #tpu.memory_space<vmem>>, vector<4x256xf32>,
    %c16 = arith.constant 16 : index
    %c0_12 = arith.constant 0 : index
    %67 = vector.load %arg9[%c16, %c0_12] : memref<36x256xf32, #tpu.memory_space<vmem>>, vector<4x256xf32>
    tpu.vector_store %arg9[%c16, %c0_12], %1 {strides = array<i32>} : memref<36x256xf32, #tpu.memory_space<vmem>>, vector<4x256xf32>,
    %c20 = arith.constant 20 : index
    %c0_13 = arith.constant 0 : index
    %68 = vector.load %arg9[%c20, %c0_13] : memref<36x256xf32, #tpu.memory_space<vmem>>, vector<4x256xf32>
    tpu.vector_store %arg9[%c20, %c0_13], %65 {strides = array<i32>} : memref<36x256xf32, #tpu.memory_space<vmem>>, vector<4x256xf32>,
    %69 = vector.extract_strided_slice %38 {offsets = [0, 255], sizes = [4, 1], strides = [1, 1]} : vector<4x256xf32> to vector<4x1xf32>
    %70 = vector.extract_strided_slice %38 {offsets = [0, 0], sizes = [4, 255], strides = [1, 1]} : vector<4x256xf32> to vector<4x255xf32>
    %71 = tpu.concatenate %69, %70 in 1 : vector<4x1xf32>, vector<4x255xf32> -> vector<4x256xf32>
    %72 = vector.extract_strided_slice %38 {offsets = [0, 1], sizes = [4, 255], strides = [1, 1]} : vector<4x256xf32> to vector<4x255xf32>
    %73 = vector.extract_strided_slice %38 {offsets = [0, 0], sizes = [4, 1], strides = [1, 1]} : vector<4x256xf32> to vector<4x1xf32>
    %74 = tpu.concatenate %72, %73 in 1 : vector<4x255xf32>, vector<4x1xf32> -> vector<4x256xf32>
    %75 = vector.shape_cast %20 : vector<1x256xi1> to vector<1x256xi1>
    %76 = vector.broadcast %75 : vector<1x256xi1> to vector<4x256xi1>
    %77 = arith.select %76, %74, %71 : vector<4x256xi1>, vector<4x256xf32>
    %78 = vector.shape_cast %22 : vector<1x256xi1> to vector<1x256xi1>
    %79 = vector.broadcast %78 : vector<1x256xi1> to vector<4x256xi1>
    %80 = arith.select %79, %71, %74 : vector<4x256xi1>, vector<4x256xf32>
    %c24 = arith.constant 24 : index
    %c0_14 = arith.constant 0 : index
    %81 = vector.load %arg9[%c24, %c0_14] : memref<36x256xf32, #tpu.memory_space<vmem>>, vector<4x256xf32>
    tpu.vector_store %arg9[%c24, %c0_14], %77 {strides = array<i32>} : memref<36x256xf32, #tpu.memory_space<vmem>>, vector<4x256xf32>,
    %c28 = arith.constant 28 : index
    %c0_15 = arith.constant 0 : index
    %82 = vector.load %arg9[%c28, %c0_15] : memref<36x256xf32, #tpu.memory_space<vmem>>, vector<4x256xf32>
    tpu.vector_store %arg9[%c28, %c0_15], %38 {strides = array<i32>} : memref<36x256xf32, #tpu.memory_space<vmem>>, vector<4x256xf32>,
    %c32 = arith.constant 32 : index
    %c0_16 = arith.constant 0 : index
    %83 = vector.load %arg9[%c32, %c0_16] : memref<36x256xf32, #tpu.memory_space<vmem>>, vector<4x256xf32>
    tpu.vector_store %arg9[%c32, %c0_16], %80 {strides = array<i32>} : memref<36x256xf32, #tpu.memory_space<vmem>>, vector<4x256xf32>,
    %c0_17 = arith.constant 0 : index
    %c0_18 = arith.constant 0 : index
    %84 = vector.load %arg2[%c0_17, %c0_18] : memref<4x36xf32, #tpu.memory_space<vmem>>, vector<4x36xf32>
    %c0_19 = arith.constant 0 : index
    %c0_20 = arith.constant 0 : index
    %85 = vector.load %arg9[%c0_19, %c0_20] : memref<36x256xf32, #tpu.memory_space<vmem>>, vector<36x256xf32>
    %cst = arith.constant dense<0.000000e+00> : vector<4x256xf32>
    %86 = tpu.matmul %84, %85, %cst {dimension_numbers = #tpu.dot_dimension_numbers<[1], [0], [0], [1], [0, 0, 1, 1], [], []>, precision = #tpu.contract_precision<fp32>} : vector<4x36xf32>, vector<36x256xf32>, vector<4x256xf32> -> vector<4x256xf32>
    %cst_21 = arith.constant dense<0.000000e+00> : vector<4xf32>
    %87 = vector.multi_reduction <add>, %86, %cst_21 [1] : vector<4x256xf32> to vector<4xf32>
    %88 = vector.shape_cast %87 : vector<4xf32> to vector<4x1xf32>
    %cst_22 = arith.constant 3.906250e-03 : f32
    %89 = vector.broadcast %cst_22 : f32 to vector<4x1xf32>
    %90 = arith.mulf %88, %89 : vector<4x1xf32>
    %91 = arith.mulf %86, %86 : vector<4x256xf32>
    %cst_23 = arith.constant dense<0.000000e+00> : vector<4xf32>
    %92 = vector.multi_reduction <add>, %91, %cst_23 [1] : vector<4x256xf32> to vector<4xf32>
    %93 = vector.shape_cast %92 : vector<4xf32> to vector<4x1xf32>
    %cst_24 = arith.constant 3.906250e-03 : f32
    %94 = vector.broadcast %cst_24 : f32 to vector<4x1xf32>
    %95 = arith.mulf %93, %94 : vector<4x1xf32>
    %96 = arith.mulf %90, %90 : vector<4x1xf32>
    %97 = arith.subf %95, %96 : vector<4x1xf32>
    %c0_25 = arith.constant 0 : index
    %c0_26 = arith.constant 0 : index
    %98 = vector.load %arg3[%c0_25, %c0_26] : memref<4x1xf32, #tpu.memory_space<vmem>>, vector<4x1xf32>
    %cst_27 = arith.constant 9.99999974E-6 : f32
    %99 = vector.broadcast %cst_27 : f32 to vector<4x1xf32>
    %100 = arith.addf %97, %99 : vector<4x1xf32>
    %101 = math.rsqrt %100 : vector<4x1xf32>
    %102 = arith.mulf %98, %101 : vector<4x1xf32>
    %c0_28 = arith.constant 0 : index
    %c0_29 = arith.constant 0 : index
    %103 = vector.load %arg4[%c0_28, %c0_29] : memref<4x1xf32, #tpu.memory_space<vmem>>, vector<4x1xf32>
    %104 = arith.mulf %90, %102 : vector<4x1xf32>
    %105 = arith.subf %103, %104 : vector<4x1xf32>
    %106 = vector.broadcast %102 : vector<4x1xf32> to vector<4x256xf32>
    %107 = arith.mulf %86, %106 : vector<4x256xf32>
    %108 = vector.broadcast %105 : vector<4x1xf32> to vector<4x256xf32>
    %109 = arith.addf %107, %108 : vector<4x256xf32>
    %cst_30 = arith.constant 0.000000e+00 : f32
    %110 = vector.broadcast %cst_30 : f32 to vector<4x256xf32>
    %111 = arith.maximumf %109, %110 : vector<4x256xf32>
    %112 = vector.extract_strided_slice %111 {offsets = [0, 240], sizes = [4, 16], strides = [1, 1]} : vector<4x256xf32> to vector<4x16xf32>
    %113 = vector.extract_strided_slice %111 {offsets = [0, 0], sizes = [4, 240], strides = [1, 1]} : vector<4x256xf32> to vector<4x240xf32>
    %114 = tpu.concatenate %112, %113 in 1 : vector<4x16xf32>, vector<4x240xf32> -> vector<4x256xf32>
    %115 = vector.extract_strided_slice %111 {offsets = [0, 16], sizes = [4, 240], strides = [1, 1]} : vector<4x256xf32> to vector<4x240xf32>
    %116 = vector.extract_strided_slice %111 {offsets = [0, 0], sizes = [4, 16], strides = [1, 1]} : vector<4x256xf32> to vector<4x16xf32>
    %117 = tpu.concatenate %115, %116 in 1 : vector<4x240xf32>, vector<4x16xf32> -> vector<4x256xf32>
    %118 = vector.shape_cast %24 : vector<1x256xi1> to vector<1x256xi1>
    %119 = vector.broadcast %118 : vector<1x256xi1> to vector<4x256xi1>
    %120 = arith.select %119, %117, %114 : vector<4x256xi1>, vector<4x256xf32>
    %121 = vector.shape_cast %26 : vector<1x256xi1> to vector<1x256xi1>
    %122 = vector.broadcast %121 : vector<1x256xi1> to vector<4x256xi1>
    %123 = arith.select %122, %114, %117 : vector<4x256xi1>, vector<4x256xf32>
    %124 = vector.extract_strided_slice %120 {offsets = [0, 255], sizes = [4, 1], strides = [1, 1]} : vector<4x256xf32> to vector<4x1xf32>
    %125 = vector.extract_strided_slice %120 {offsets = [0, 0], sizes = [4, 255], strides = [1, 1]} : vector<4x256xf32> to vector<4x255xf32>
    %126 = tpu.concatenate %124, %125 in 1 : vector<4x1xf32>, vector<4x255xf32> -> vector<4x256xf32>
    %127 = vector.extract_strided_slice %120 {offsets = [0, 1], sizes = [4, 255], strides = [1, 1]} : vector<4x256xf32> to vector<4x255xf32>
    %128 = vector.extract_strided_slice %120 {offsets = [0, 0], sizes = [4, 1], strides = [1, 1]} : vector<4x256xf32> to vector<4x1xf32>
    %129 = tpu.concatenate %127, %128 in 1 : vector<4x255xf32>, vector<4x1xf32> -> vector<4x256xf32>
    %130 = vector.shape_cast %20 : vector<1x256xi1> to vector<1x256xi1>
    %131 = vector.broadcast %130 : vector<1x256xi1> to vector<4x256xi1>
    %132 = arith.select %131, %129, %126 : vector<4x256xi1>, vector<4x256xf32>
    %133 = vector.shape_cast %22 : vector<1x256xi1> to vector<1x256xi1>
    %134 = vector.broadcast %133 : vector<1x256xi1> to vector<4x256xi1>
    %135 = arith.select %134, %126, %129 : vector<4x256xi1>, vector<4x256xf32>
    %c0_31 = arith.constant 0 : index
    %c0_32 = arith.constant 0 : index
    %136 = vector.load %arg9[%c0_31, %c0_32] : memref<36x256xf32, #tpu.memory_space<vmem>>, vector<4x256xf32>
    tpu.vector_store %arg9[%c0_31, %c0_32], %132 {strides = array<i32>} : memref<36x256xf32, #tpu.memory_space<vmem>>, vector<4x256xf32>,
    %c4_33 = arith.constant 4 : index
    %c0_34 = arith.constant 0 : index
    %137 = vector.load %arg9[%c4_33, %c0_34] : memref<36x256xf32, #tpu.memory_space<vmem>>, vector<4x256xf32>
    tpu.vector_store %arg9[%c4_33, %c0_34], %120 {strides = array<i32>} : memref<36x256xf32, #tpu.memory_space<vmem>>, vector<4x256xf32>,
    %c8_35 = arith.constant 8 : index
    %c0_36 = arith.constant 0 : index
    %138 = vector.load %arg9[%c8_35, %c0_36] : memref<36x256xf32, #tpu.memory_space<vmem>>, vector<4x256xf32>
    tpu.vector_store %arg9[%c8_35, %c0_36], %135 {strides = array<i32>} : memref<36x256xf32, #tpu.memory_space<vmem>>, vector<4x256xf32>,
    %139 = vector.extract_strided_slice %111 {offsets = [0, 255], sizes = [4, 1], strides = [1, 1]} : vector<4x256xf32> to vector<4x1xf32>
    %140 = vector.extract_strided_slice %111 {offsets = [0, 0], sizes = [4, 255], strides = [1, 1]} : vector<4x256xf32> to vector<4x255xf32>
    %141 = tpu.concatenate %139, %140 in 1 : vector<4x1xf32>, vector<4x255xf32> -> vector<4x256xf32>
    %142 = vector.extract_strided_slice %111 {offsets = [0, 1], sizes = [4, 255], strides = [1, 1]} : vector<4x256xf32> to vector<4x255xf32>
    %143 = vector.extract_strided_slice %111 {offsets = [0, 0], sizes = [4, 1], strides = [1, 1]} : vector<4x256xf32> to vector<4x1xf32>
    %144 = tpu.concatenate %142, %143 in 1 : vector<4x255xf32>, vector<4x1xf32> -> vector<4x256xf32>
    %145 = vector.shape_cast %20 : vector<1x256xi1> to vector<1x256xi1>
    %146 = vector.broadcast %145 : vector<1x256xi1> to vector<4x256xi1>
    %147 = arith.select %146, %144, %141 : vector<4x256xi1>, vector<4x256xf32>
    %148 = vector.shape_cast %22 : vector<1x256xi1> to vector<1x256xi1>
    %149 = vector.broadcast %148 : vector<1x256xi1> to vector<4x256xi1>
    %150 = arith.select %149, %141, %144 : vector<4x256xi1>, vector<4x256xf32>
    %c12_37 = arith.constant 12 : index
    %c0_38 = arith.constant 0 : index
    %151 = vector.load %arg9[%c12_37, %c0_38] : memref<36x256xf32, #tpu.memory_space<vmem>>, vector<4x256xf32>
    tpu.vector_store %arg9[%c12_37, %c0_38], %147 {strides = array<i32>} : memref<36x256xf32, #tpu.memory_space<vmem>>, vector<4x256xf32>,
    %c16_39 = arith.constant 16 : index
    %c0_40 = arith.constant 0 : index
    %152 = vector.load %arg9[%c16_39, %c0_40] : memref<36x256xf32, #tpu.memory_space<vmem>>, vector<4x256xf32>
    tpu.vector_store %arg9[%c16_39, %c0_40], %111 {strides = array<i32>} : memref<36x256xf32, #tpu.memory_space<vmem>>, vector<4x256xf32>,
    %c20_41 = arith.constant 20 : index
    %c0_42 = arith.constant 0 : index
    %153 = vector.load %arg9[%c20_41, %c0_42] : memref<36x256xf32, #tpu.memory_space<vmem>>, vector<4x256xf32>
    tpu.vector_store %arg9[%c20_41, %c0_42], %150 {strides = array<i32>} : memref<36x256xf32, #tpu.memory_space<vmem>>, vector<4x256xf32>,
    %154 = vector.extract_strided_slice %123 {offsets = [0, 255], sizes = [4, 1], strides = [1, 1]} : vector<4x256xf32> to vector<4x1xf32>
    %155 = vector.extract_strided_slice %123 {offsets = [0, 0], sizes = [4, 255], strides = [1, 1]} : vector<4x256xf32> to vector<4x255xf32>
    %156 = tpu.concatenate %154, %155 in 1 : vector<4x1xf32>, vector<4x255xf32> -> vector<4x256xf32>
    %157 = vector.extract_strided_slice %123 {offsets = [0, 1], sizes = [4, 255], strides = [1, 1]} : vector<4x256xf32> to vector<4x255xf32>
    %158 = vector.extract_strided_slice %123 {offsets = [0, 0], sizes = [4, 1], strides = [1, 1]} : vector<4x256xf32> to vector<4x1xf32>
    %159 = tpu.concatenate %157, %158 in 1 : vector<4x255xf32>, vector<4x1xf32> -> vector<4x256xf32>
    %160 = vector.shape_cast %20 : vector<1x256xi1> to vector<1x256xi1>
    %161 = vector.broadcast %160 : vector<1x256xi1> to vector<4x256xi1>
    %162 = arith.select %161, %159, %156 : vector<4x256xi1>, vector<4x256xf32>
    %163 = vector.shape_cast %22 : vector<1x256xi1> to vector<1x256xi1>
    %164 = vector.broadcast %163 : vector<1x256xi1> to vector<4x256xi1>
    %165 = arith.select %164, %156, %159 : vector<4x256xi1>, vector<4x256xf32>
    %c24_43 = arith.constant 24 : index
    %c0_44 = arith.constant 0 : index
    %166 = vector.load %arg9[%c24_43, %c0_44] : memref<36x256xf32, #tpu.memory_space<vmem>>, vector<4x256xf32>
    tpu.vector_store %arg9[%c24_43, %c0_44], %162 {strides = array<i32>} : memref<36x256xf32, #tpu.memory_space<vmem>>, vector<4x256xf32>,
    %c28_45 = arith.constant 28 : index
    %c0_46 = arith.constant 0 : index
    %167 = vector.load %arg9[%c28_45, %c0_46] : memref<36x256xf32, #tpu.memory_space<vmem>>, vector<4x256xf32>
    tpu.vector_store %arg9[%c28_45, %c0_46], %123 {strides = array<i32>} : memref<36x256xf32, #tpu.memory_space<vmem>>, vector<4x256xf32>,
    %c32_47 = arith.constant 32 : index
    %c0_48 = arith.constant 0 : index
    %168 = vector.load %arg9[%c32_47, %c0_48] : memref<36x256xf32, #tpu.memory_space<vmem>>, vector<4x256xf32>
    tpu.vector_store %arg9[%c32_47, %c0_48], %165 {strides = array<i32>} : memref<36x256xf32, #tpu.memory_space<vmem>>, vector<4x256xf32>,
    %c0_49 = arith.constant 0 : index
    %c0_50 = arith.constant 0 : index
    %169 = vector.load %arg5[%c0_49, %c0_50] : memref<4x36xf32, #tpu.memory_space<vmem>>, vector<4x36xf32>
    %c0_51 = arith.constant 0 : index
    %c0_52 = arith.constant 0 : index
    %170 = vector.load %arg9[%c0_51, %c0_52] : memref<36x256xf32, #tpu.memory_space<vmem>>, vector<36x256xf32>
    %cst_53 = arith.constant dense<0.000000e+00> : vector<4x256xf32>
    %171 = tpu.matmul %169, %170, %cst_53 {dimension_numbers = #tpu.dot_dimension_numbers<[1], [0], [0], [1], [0, 0, 1, 1], [], []>, precision = #tpu.contract_precision<fp32>} : vector<4x36xf32>, vector<36x256xf32>, vector<4x256xf32> -> vector<4x256xf32>
    %cst_54 = arith.constant dense<0.000000e+00> : vector<4xf32>
    %172 = vector.multi_reduction <add>, %171, %cst_54 [1] : vector<4x256xf32> to vector<4xf32>
    %173 = vector.shape_cast %172 : vector<4xf32> to vector<4x1xf32>
    %cst_55 = arith.constant 3.906250e-03 : f32
    %174 = vector.broadcast %cst_55 : f32 to vector<4x1xf32>
    %175 = arith.mulf %173, %174 : vector<4x1xf32>
    %176 = arith.mulf %171, %171 : vector<4x256xf32>
    %cst_56 = arith.constant dense<0.000000e+00> : vector<4xf32>
    %177 = vector.multi_reduction <add>, %176, %cst_56 [1] : vector<4x256xf32> to vector<4xf32>
    %178 = vector.shape_cast %177 : vector<4xf32> to vector<4x1xf32>
    %cst_57 = arith.constant 3.906250e-03 : f32
    %179 = vector.broadcast %cst_57 : f32 to vector<4x1xf32>
    %180 = arith.mulf %178, %179 : vector<4x1xf32>
    %181 = arith.mulf %175, %175 : vector<4x1xf32>
    %182 = arith.subf %180, %181 : vector<4x1xf32>
    %c0_58 = arith.constant 0 : index
    %c0_59 = arith.constant 0 : index
    %183 = vector.load %arg6[%c0_58, %c0_59] : memref<4x1xf32, #tpu.memory_space<vmem>>, vector<4x1xf32>
    %cst_60 = arith.constant 9.99999974E-6 : f32
    %184 = vector.broadcast %cst_60 : f32 to vector<4x1xf32>
    %185 = arith.addf %182, %184 : vector<4x1xf32>
    %186 = math.rsqrt %185 : vector<4x1xf32>
    %187 = arith.mulf %183, %186 : vector<4x1xf32>
    %c0_61 = arith.constant 0 : index
    %c0_62 = arith.constant 0 : index
    %188 = vector.load %arg7[%c0_61, %c0_62] : memref<4x1xf32, #tpu.memory_space<vmem>>, vector<4x1xf32>
    %189 = arith.mulf %175, %187 : vector<4x1xf32>
    %190 = arith.subf %188, %189 : vector<4x1xf32>
    %191 = vector.broadcast %187 : vector<4x1xf32> to vector<4x256xf32>
    %192 = arith.mulf %171, %191 : vector<4x256xf32>
    %193 = vector.broadcast %190 : vector<4x1xf32> to vector<4x256xf32>
    %194 = arith.addf %192, %193 : vector<4x256xf32>
    %195 = arith.addf %194, %1 : vector<4x256xf32>
    %cst_63 = arith.constant 0.000000e+00 : f32
    %196 = vector.broadcast %cst_63 : f32 to vector<4x256xf32>
    %197 = arith.maximumf %195, %196 : vector<4x256xf32>
    %c0_64 = arith.constant 0 : index
    %c0_65 = arith.constant 0 : index
    %c0_66 = arith.constant 0 : index
    %198 = vector.load %arg8[%c0_64, %c0_65, %c0_66] : memref<1x4x256xf32, #tpu.memory_space<vmem>>, vector<1x4x256xf32>
    %199 = vector.shape_cast %198 : vector<1x4x256xf32> to vector<4x256xf32>
    %200 = vector.shape_cast %197 : vector<4x256xf32> to vector<1x4x256xf32>
    tpu.vector_store %arg8[%c0_64, %c0_65, %c0_66], %200 {strides = array<i32>} : memref<1x4x256xf32, #tpu.memory_space<vmem>>, vector<1x4x256xf32>,
    return
  }
  func.func @transform_0(%arg0: i32) -> (i32, i32, i32) {
    %c0_i32 = arith.constant 0 : i32
    %c0_i32_0 = arith.constant 0 : i32
    %c0_i32_1 = arith.constant 0 : i32
    return %arg0, %c0_i32, %c0_i32_0 : i32, i32, i32
  }
  func.func @transform_1(%arg0: i32) -> (i32, i32) {
    %c0_i32 = arith.constant 0 : i32
    %c0_i32_0 = arith.constant 0 : i32
    %c0_i32_1 = arith.constant 0 : i32
    return %c0_i32, %c0_i32_0 : i32, i32
  }
  func.func @transform_2(%arg0: i32) -> (i32, i32) {
    %c0_i32 = arith.constant 0 : i32
    %c0_i32_0 = arith.constant 0 : i32
    %c0_i32_1 = arith.constant 0 : i32
    return %c0_i32, %c0_i32_0 : i32, i32
  }
  func.func @transform_3(%arg0: i32) -> (i32, i32) {
    %c0_i32 = arith.constant 0 : i32
    %c0_i32_0 = arith.constant 0 : i32
    %c0_i32_1 = arith.constant 0 : i32
    return %c0_i32, %c0_i32_0 : i32, i32
  }
  func.func @transform_4(%arg0: i32) -> (i32, i32) {
    %c0_i32 = arith.constant 0 : i32
    %c0_i32_0 = arith.constant 0 : i32
    %c0_i32_1 = arith.constant 0 : i32
    return %c0_i32, %c0_i32_0 : i32, i32
  }
  func.func @transform_5(%arg0: i32) -> (i32, i32) {
    %c0_i32 = arith.constant 0 : i32
    %c0_i32_0 = arith.constant 0 : i32
    %c0_i32_1 = arith.constant 0 : i32
    return %c0_i32, %c0_i32_0 : i32, i32
  }
  func.func @transform_6(%arg0: i32) -> (i32, i32) {
    %c0_i32 = arith.constant 0 : i32
    %c0_i32_0 = arith.constant 0 : i32
    %c0_i32_1 = arith.constant 0 : i32
    return %c0_i32, %c0_i32_0 : i32, i32
  }
  func.func @transform_7(%arg0: i32) -> (i32, i32, i32) {
    %c0_i32 = arith.constant 0 : i32
    %c0_i32_0 = arith.constant 0 : i32
    %c0_i32_1 = arith.constant 0 : i32
    return %arg0, %c0_i32, %c0_i32_0 : i32, i32, i32
  }
}

</mosaic_0001>

<llo_original>
// kernel: residual_block.1
$region0: #{residual_block.1}
  #allocation0 [shape = 'u32[]', space=smem, size = 0x4, offset = 0x4, fixed_abs, tag = 'smem constant byte address 0x4 - core index']
  #allocation1 [shape = 'u32[144,128]{1,0:T(1,128)}', space=vmem, size = 0x12000, scoped, tag = 'internal scratch']
  #allocation2 [shape = 'f32[36,256]{1,0:T(8,128)}', space=vmem, size = 0xa000, scoped, tag = 'scratch operand']
  %s0 = inlined_call_operand.vmem [shape: f32[2,4,256], index: 0, kind: input, shape index: {}]
  %s1 = inlined_call_operand.vmem [shape: f32[4,36], index: 1, kind: input, shape index: {}]
  %s2 = inlined_call_operand.vmem [shape: f32[4,1], index: 2, kind: input, shape index: {}]
  %s3 = inlined_call_operand.vmem [shape: f32[4,1], index: 3, kind: input, shape index: {}]
  %s4 = inlined_call_operand.vmem [shape: f32[4,36], index: 4, kind: input, shape index: {}]
  %s5 = inlined_call_operand.vmem [shape: f32[4,1], index: 5, kind: input, shape index: {}]
  %s6 = inlined_call_operand.vmem [shape: f32[4,1], index: 6, kind: input, shape index: {}]
  %s7 = inlined_call_operand.vmem [shape: f32[2,4,256], index: 7, kind: output, shape index: {}]
  %s8 = sld [smem:[#allocation0]]
  $region61: #{residual_block.1} parent=0
    _
  %s10 = ssub.s32 1, %s8
  %s11 = scalar_select 0, %s10, %s8
  loop: start=0, step=1, limit=4
  $region2: #{residual_block.1} parent=0 // loop_pre_header
    _
  $region3: #{residual_block.1} parent=0 // loop_header
    %s13 = sphi 0, %s17
    %p14 = scmp.ge.s32.totalorder %s13, 4
    %s23 = sphi 0, %s25
    %s26 = sphi 0, %s23
    %s27 = sphi 0, %s26
    %s43 = sphi 0, %s27
    %s47 = sphi 0, %s47
    %s49 = sphi 0, %s47
    %s50 = sphi 0, %s49
    %s64 = sphi 0, %s50
    %s68 = sphi 0, %s68
    %s70 = sphi 0, %s68
    %s71 = sphi 0, %s70
    %s85 = sphi 0, %s71
    %s89 = sphi 0, %s89
    %s91 = sphi 0, %s89
    %s92 = sphi 0, %s91
    %s106 = sphi 0, %s92
    %s110 = sphi 0, %s110
    %s112 = sphi 0, %s110
    %s113 = sphi 0, %s112
    %s127 = sphi 0, %s113
    %s131 = sphi 0, %s131
    %s133 = sphi 0, %s131
    %s134 = sphi 0, %s133
    %s148 = sphi 0, %s134
    %s152 = sphi 0, %s152
    %s154 = sphi 0, %s152
    %s155 = sphi 0, %s154
    %s169 = sphi 0, %s155
    %s175 = sphi 0, %s177
    %s178 = sphi 0, %s175
    %s179 = sphi 0, %s178
    %s195 = sphi 0, %s179
  $region4: #{residual_block.1} parent=0 // loop_header_branch
    %16 = sbr.rel (%p14) target = $region8
  $region5: #{residual_block.1} parent=0 // loop_body
    %s18 = ssub.s32 %s13, 1
    %s19 = ssub.s32 %s13, 2
    %s20 = sadd.s32 %s13, 1
    %s21 = ssub.s32 %s13, %s20
    %p22 = scmp.eq.s32.totalorder %s21, 0
    %s24 = sadd.s32 %s23, 1
    %s25 = scalar_select %p22, %s23, %s24
    %p28 = pneg %p22
    %p29 = scmp.eq.s32.totalorder %s13, 1
    %p30 = por %p28, %p29
    %p31 = scmp.ne.s32.totalorder %s23, %s26
    %p32 = scmp.eq.s32.totalorder %s13, 0
    %p33 = por %p31, %p32
    %p34 = scmp.ne.s32.totalorder %s23, %s26
    %p35 = scmp.eq.s32.totalorder %s18, 1
    %p36 = por %p34, %p35
    %p37 = scmp.ne.s32.totalorder %s26, %s27
    %p38 = scmp.eq.s32.totalorder %s18, 0
    %p39 = por %p37, %p38
    %p40 = scmp.ne.s32.totalorder %s26, %s27
    %p41 = scmp.eq.s32.totalorder %s19, 1
    %p42 = por %p40, %p41
    %p44 = scmp.ne.s32.totalorder %s27, %s43
    %p45 = scmp.eq.s32.totalorder %s19, 0
    %p46 = por %p44, %p45
    %s48 = sadd.s32 %s47, 1
    %p51 = scmp.eq.s32.totalorder %s13, 1
    %p52 = scmp.ne.s32.totalorder %s47, %s49
    %p53 = scmp.eq.s32.totalorder %s13, 0
    %p54 = por %p52, %p53
    %p55 = scmp.ne.s32.totalorder %s47, %s49
    %p56 = scmp.eq.s32.totalorder %s18, 1
    %p57 = por %p55, %p56
    %p58 = scmp.ne.s32.totalorder %s49, %s50
    %p59 = scmp.eq.s32.totalorder %s18, 0
    %p60 = por %p58, %p59
    %p61 = scmp.ne.s32.totalorder %s49, %s50
    %p62 = scmp.eq.s32.totalorder %s19, 1
    %p63 = por %p61, %p62
    %p65 = scmp.ne.s32.totalorder %s50, %s64
    %p66 = scmp.eq.s32.totalorder %s19, 0
    %p67 = por %p65, %p66
    %s69 = sadd.s32 %s68, 1
    %p72 = scmp.eq.s32.totalorder %s13, 1
    %p73 = scmp.ne.s32.totalorder %s68, %s70
    %p74 = scmp.eq.s32.totalorder %s13, 0
    %p75 = por %p73, %p74
    %p76 = scmp.ne.s32.totalorder %s68, %s70
    %p77 = scmp.eq.s32.totalorder %s18, 1
    %p78 = por %p76, %p77
    %p79 = scmp.ne.s32.totalorder %s70, %s71
    %p80 = scmp.eq.s32.totalorder %s18, 0
    %p81 = por %p79, %p80
    %p82 = scmp.ne.s32.totalorder %s70, %s71
    %p83 = scmp.eq.s32.totalorder %s19, 1
    %p84 = por %p82, %p83
    %p86 = scmp.ne.s32.totalorder %s71, %s85
    %p87 = scmp.eq.s32.totalorder %s19, 0
    %p88 = por %p86, %p87
    %s90 = sadd.s32 %s89, 1
    %p93 = scmp.eq.s32.totalorder %s13, 1
    %p94 = scmp.ne.s32.totalorder %s89, %s91
    %p95 = scmp.eq.s32.totalorder %s13, 0
    %p96 = por %p94, %p95
    %p97 = scmp.ne.s32.totalorder %s89, %s91
    %p98 = scmp.eq.s32.totalorder %s18, 1
    %p99 = por %p97, %p98
    %p100 = scmp.ne.s32.totalorder %s91, %s92
    %p101 = scmp.eq.s32.totalorder %s18, 0
    %p102 = por %p100, %p101
    %p103 = scmp.ne.s32.totalorder %s91, %s92
    %p104 = scmp.eq.s32.totalorder %s19, 1
    %p105 = por %p103, %p104
    %p107 = scmp.ne.s32.totalorder %s92, %s106
    %p108 = scmp.eq.s32.totalorder %s19, 0
    %p109 = por %p107, %p108
    %s111 = sadd.s32 %s110, 1
    %p114 = scmp.eq.s32.totalorder %s13, 1
    %p115 = scmp.ne.s32.totalorder %s110, %s112
    %p116 = scmp.eq.s32.totalorder %s13, 0
    %p117 = por %p115, %p116
    %p118 = scmp.ne.s32.totalorder %s110, %s112
    %p119 = scmp.eq.s32.totalorder %s18, 1
    %p120 = por %p118, %p119
    %p121 = scmp.ne.s32.totalorder %s112, %s113
    %p122 = scmp.eq.s32.totalorder %s18, 0
    %p123 = por %p121, %p122
    %p124 = scmp.ne.s32.totalorder %s112, %s113
    %p125 = scmp.eq.s32.totalorder %s19, 1
    %p126 = por %p124, %p125
    %p128 = scmp.ne.s32.totalorder %s113, %s127
    %p129 = scmp.eq.s32.totalorder %s19, 0
    %p130 = por %p128, %p129
    %s132 = sadd.s32 %s131, 1
    %p135 = scmp.eq.s32.totalorder %s13, 1
    %p136 = scmp.ne.s32.totalorder %s131, %s133
    %p137 = scmp.eq.s32.totalorder %s13, 0
    %p138 = por %p136, %p137
    %p139 = scmp.ne.s32.totalorder %s131, %s133
    %p140 = scmp.eq.s32.totalorder %s18, 1
    %p141 = por %p139, %p140
    %p142 = scmp.ne.s32.totalorder %s133, %s134
    %p143 = scmp.eq.s32.totalorder %s18, 0
    %p144 = por %p142, %p143
    %p145 = scmp.ne.s32.totalorder %s133, %s134
    %p146 = scmp.eq.s32.totalorder %s19, 1
    %p147 = por %p145, %p146
    %p149 = scmp.ne.s32.totalorder %s134, %s148
    %p150 = scmp.eq.s32.totalorder %s19, 0
    %p151 = por %p149, %p150
    %s153 = sadd.s32 %s152, 1
    %p156 = scmp.eq.s32.totalorder %s13, 1
    %p157 = scmp.ne.s32.totalorder %s152, %s154
    %p158 = scmp.eq.s32.totalorder %s13, 0
    %p159 = por %p157, %p158
    %p160 = scmp.ne.s32.totalorder %s152, %s154
    %p161 = scmp.eq.s32.totalorder %s18, 1
    %p162 = por %p160, %p161
    %p163 = scmp.ne.s32.totalorder %s154, %s155
    %p164 = scmp.eq.s32.totalorder %s18, 0
    %p165 = por %p163, %p164
    %p166 = scmp.ne.s32.totalorder %s154, %s155
    %p167 = scmp.eq.s32.totalorder %s19, 1
    %p168 = por %p166, %p167
    %p170 = scmp.ne.s32.totalorder %s155, %s169
    %p171 = scmp.eq.s32.totalorder %s19, 0
    %p172 = por %p170, %p171
    %s173 = ssub.s32 %s13, %s20
    %p174 = scmp.eq.s32.totalorder %s173, 0
    %s176 = sadd.s32 %s175, 1
    %s177 = scalar_select %p174, %s175, %s176
    %p180 = pneg %p174
    %p181 = scmp.eq.s32.totalorder %s13, 1
    %p182 = por %p180, %p181
    %p183 = scmp.ne.s32.totalorder %s175, %s178
    %p184 = scmp.eq.s32.totalorder %s13, 0
    %p185 = por %p183, %p184
    %p186 = scmp.ne.s32.totalorder %s175, %s178
    %p187 = scmp.eq.s32.totalorder %s18, 1
    %p188 = por %p186, %p187
    %p189 = scmp.ne.s32.totalorder %s178, %s179
    %p190 = scmp.eq.s32.totalorder %s18, 0
    %p191 = por %p189, %p190
    %p192 = scmp.ne.s32.totalorder %s178, %s179
    %p193 = scmp.eq.s32.totalorder %s19, 1
    %p194 = por %p192, %p193
    %p196 = scmp.ne.s32.totalorder %s179, %s195
    %p197 = scmp.eq.s32.totalorder %s19, 0
    %p198 = por %p196, %p197
    %p199 = scmp.le.s32.totalorder 1, %s13
    %p200 = scmp.lt.s32.totalorder %s13, 3
    %p201 = pnand %p199, %p200
    %p202 = pneg %p201
    // Predicated region
    $region9: #{residual_block.1} parent=5 // pred_check
      _
    $region10: #{residual_block.1} parent=5 // pred_check_branch
      %204 = sbr.rel (%p201) target = $region12
    $region11: #{residual_block.1} parent=5 // pred_region
      %s205 = ssub.s32 %s13, 1
      // Predicated region
      $region13: #{residual_block.1} parent=11 // pred_check
        %p206 = pneg %p60
      $region14: #{residual_block.1} parent=11 // pred_check_branch
        %208 = sbr.rel (%p206) target = $region16
      $region15: #{residual_block.1} parent=11 // pred_region
        _
      $region16: #{residual_block.1} parent=11 // pred_fallthru
        _
      // Predicated region
      $region17: #{residual_block.1} parent=11 // pred_check
        %p209 = pneg %p81
      $region18: #{residual_block.1} parent=11 // pred_check_branch
        %211 = sbr.rel (%p209) target = $region20
      $region19: #{residual_block.1} parent=11 // pred_region
        _
      $region20: #{residual_block.1} parent=11 // pred_fallthru
        _
      // Predicated region
      $region21: #{residual_block.1} parent=11 // pred_check
        %p212 = pneg %p102
      $region22: #{residual_block.1} parent=11 // pred_check_branch
        %214 = sbr.rel (%p212) target = $region24
      $region23: #{residual_block.1} parent=11 // pred_region
        _
      $region24: #{residual_block.1} parent=11 // pred_fallthru
        _
      // Predicated region
      $region25: #{residual_block.1} parent=11 // pred_check
        %p215 = pneg %p123
      $region26: #{residual_block.1} parent=11 // pred_check_branch
        %217 = sbr.rel (%p215) target = $region28
      $region27: #{residual_block.1} parent=11 // pred_region
        _
      $region28: #{residual_block.1} parent=11 // pred_fallthru
        _
      // Predicated region
      $region29: #{residual_block.1} parent=11 // pred_check
        %p218 = pneg %p144
      $region30: #{residual_block.1} parent=11 // pred_check_branch
        %220 = sbr.rel (%p218) target = $region32
      $region31: #{residual_block.1} parent=11 // pred_region
        _
      $region32: #{residual_block.1} parent=11 // pred_fallthru
        _
      // Predicated region
      $region33: #{residual_block.1} parent=11 // pred_check
        %p221 = pneg %p165
      $region34: #{residual_block.1} parent=11 // pred_check_branch
        %223 = sbr.rel (%p221) target = $region36
      $region35: #{residual_block.1} parent=11 // pred_region
        _
      $region36: #{residual_block.1} parent=11 // pred_fallthru
        _
    $region12: #{residual_block.1} parent=5 // pred_fallthru
      _
    %p224 = scmp.lt.s32.totalorder %s13, 2
    // Predicated region
    $region37: #{residual_block.1} parent=5 // pred_check
      %p225 = pneg %p224
    $region38: #{residual_block.1} parent=5 // pred_check_branch
      %227 = sbr.rel (%p225) target = $region40
    $region39: #{residual_block.1} parent=5 // pred_region
      // Predicated region
      $region41: #{residual_block.1} parent=39 // pred_check
        %p228 = pneg %p33
      $region42: #{residual_block.1} parent=39 // pred_check_branch
        %230 = sbr.rel (%p228) target = $region44
      $region43: #{residual_block.1} parent=39 // pred_region
        %p231 = scmp.lt.s32.totalorder %s13, 1
        %s232 = scalar_select %p231, %s13, 1
        %s233 = smul.addr %s232, 2
        %s234 = smul.addr %s233, 4
        %s235 = scalar_lea.vmem %s0, %s234
      $region44: #{residual_block.1} parent=39 // pred_fallthru
        _
    $region40: #{residual_block.1} parent=5 // pred_fallthru
      _
    %p236 = scmp.le.s32.totalorder 1, %s13
    %p237 = scmp.lt.s32.totalorder %s13, 3
    %p238 = pnand %p236, %p237
    %p239 = pneg %p238
    // Predicated region
    $region45: #{residual_block.1} parent=5 // pred_check
      _
    $region46: #{residual_block.1} parent=5 // pred_check_branch
      %241 = sbr.rel (%p238) target = $region48
    $region47: #{residual_block.1} parent=5 // pred_region
      %s242 = ssub.s32 %s13, 1
      %p243 = scmp.lt.s32.totalorder %s18, 1
      %s244 = scalar_select %p243, %s18, 1
      %s245 = smul.addr %s244, 2
      %s246 = smul.addr %s245, 4
      %s247 = scalar_lea.vmem %s0, %s246
      %p248 = pneg %p39
      %p249 = pneg %p36
      %p250 = pneg %p60
      %p251 = pneg %p57
      %p252 = pneg %p81
      %p253 = pneg %p78
      %p254 = pneg %p102
      %p255 = pneg %p99
      %p256 = pneg %p123
      %p257 = pneg %p120
      %p258 = pneg %p144
      %p259 = pneg %p141
      %p260 = pneg %p165
      %p261 = pneg %p162
      %p262 = pneg %p191
      %p263 = pneg %p188
      %p264 = scmp.lt.s32.totalorder %s18, 1
      %s265 = scalar_select %p264, %s18, 1
      %s266 = smul.addr %s265, 2
      %s267 = smul.addr %s266, 4
      %s268 = scalar_lea.vmem %s7, %s267
      %p269 = scmp.lt.s32.totalorder %s18, 1
      %s270 = scalar_select %p269, %s18, 1
      %s271 = smul.addr %s270, 2
      %s272 = smul.addr %s271, 4
      %s273 = scalar_lea.vmem %s0, %s272
      %p274 = scmp.lt.s32.totalorder %s18, 1
      %s275 = scalar_select %p274, %s18, 1
      %s276 = smul.addr %s275, 2
      %s277 = smul.addr %s276, 4
      %s278 = scalar_lea.vmem %s7, %s277
      %v279 = vld [vmem:[%s273] sm:$0xff]
      %v280 = vlaneseq
      %v281 = vand.u32 %v280, 127
      %v282 = vadd.s32 %v281, 128
      %vm283 = vcmp.lt.s32.totalorder %v281, 0
      %v284 = vsub.s32 0, %v281
      %v285 = vsel %vm283, %v284, %v281
      %v286 = vshrl.u32 %v285, 4
      %v287 = vand.u32 %v285, 15
      %v288 = vsub.s32 0, %v287
      %v289 = vsel %vm283, %v288, %v287
      %vm290 = vcmp.lt.s32.totalorder %v282, 0
      %v291 = vsub.s32 0, %v282
      %v292 = vsel %vm290, %v291, %v282
      %v293 = vshrl.u32 %v292, 4
      %v294 = vand.u32 %v292, 15
      %v295 = vsub.s32 0, %v294
      %v296 = vsel %vm290, %v295, %v294
      %vm297 = vcmp.ne.s32.totalorder %v289, 0
      %vm298 = vcmp.ne.s32.totalorder %v296, 0
      %vm299 = vcmp.lt.s32.totalorder %v289, 0
      %vm300 = vcmp.lt.s32.totalorder %v296, 0
      %vm301 = vmand %vm299, %vm297
      %vm302 = vmand %vm300, %vm298
      %v303 = vadd.s32 %v289, 16
      %v304 = vadd.s32 %v296, 16
      %v305 = vsel %vm301, %v303, %v289
      %v306 = vsel %vm302, %v304, %v296
      %vm307 = vcmp.eq.s32.totalorder %v305, 0
      %vm308 = vcmp.eq.s32.totalorder %v306, 0
      %vm309 = vcmp.eq.s32.totalorder %v305, 15
      %vm310 = vcmp.eq.s32.totalorder %v306, 15
      %vm311 = vcmp.lt.s32.totalorder %v281, 16
      %vm312 = vcmp.lt.s32.totalorder %v282, 16
      %vm313 = vcmp.ge.s32.totalorder %v281, 240
      %vm314 = vcmp.ge.s32.totalorder %v282, 240
      %v316 = vcombine.high %v279, %v279
      %317 = vrot.lane.b32.xlu0 %v316, 16
      %v318 = vpop.permute.xlu0 %317
      %320 = vrot.lane.b32.xlu0 %v279, 16
      %v321 = vpop.permute.xlu0 %320
      %vm322 = vcmask 130048
      %v323 = vsel %vm322, %v321, %v318
      %v326 = vsel %vm322, %v318, %v321
      %327 = vrot.lane.b32.xlu0 %v279, 112
      %v328 = vpop.permute.xlu0 %327
      %329 = vrot.lane.b32.xlu0 %v316, 112
      %v330 = vpop.permute.xlu0 %329
      %vm331 = vcmask 916480
      %v332 = vsel %vm331, %v328, %v330
      %v336 = vsel %vm331, %v330, %v328
      %v337 = vsel %vm311, 1, 0
      %v338 = vsel %vm312, 1, 0
      %vm339 = vcmp.eq.s32.totalorder %v337, 1
      %vm340 = vcmp.eq.s32.totalorder %v338, 1
      %v341 = vsel %vm339, %v332, %v326
      %v342 = vsel %vm340, %v336, %v323
      %v343 = vsel %vm313, 1, 0
      %v344 = vsel %vm314, 1, 0
      %vm345 = vcmp.eq.s32.totalorder %v343, 1
      %vm346 = vcmp.eq.s32.totalorder %v344, 1
      %v347 = vsel %vm345, %v326, %v332
      %v348 = vsel %vm346, %v323, %v336
      %350 = vrot.lane.b32.xlu0 %v342, 1
      %v351 = vpop.permute.xlu0 %350
      %354 = vrot.lane.b32.xlu0 %v341, 1
      %v355 = vpop.permute.xlu0 %354
      %vm356 = vcmask 7168
      %v357 = vsel %vm356, %v355, %v351
      %v360 = vsel %vm356, %v351, %v355
      %361 = vrot.lane.b32.xlu0 %v341, 127
      %v362 = vpop.permute.xlu0 %361
      %363 = vrot.lane.b32.xlu0 %v342, 127
      %v364 = vpop.permute.xlu0 %363
      %vm365 = vcmask 1039360
      %v366 = vsel %vm365, %v362, %v364
      %v370 = vsel %vm365, %v364, %v362
      %v371 = vsel %vm307, 1, 0
      %v372 = vsel %vm308, 1, 0
      %vm373 = vcmp.eq.s32.totalorder %v371, 1
      %vm374 = vcmp.eq.s32.totalorder %v372, 1
      %v375 = vsel %vm373, %v366, %v360
      %v376 = vsel %vm374, %v370, %v357
      %v377 = vsel %vm309, 1, 0
      %v378 = vsel %vm310, 1, 0
      %vm379 = vcmp.eq.s32.totalorder %v377, 1
      %vm380 = vcmp.eq.s32.totalorder %v378, 1
      %v381 = vsel %vm379, %v360, %v366
      %v382 = vsel %vm380, %v357, %v370
      %383 = vst [vmem:[#allocation2] sm:$0xf] %v375
      %384 = vst [vmem:[#allocation2 + $0x8] sm:$0xf] %v376
      %v385 = vrot.slane %v341, 4
      %v386 = vrot.slane %v342, 4
      %389 = vst [vmem:[#allocation2] sm:$0xf0] %v385
      %390 = vst [vmem:[#allocation2 + $0x8] sm:$0xf0] %v386
      %391 = vst [vmem:[#allocation2 + $0x10] sm:$0xf] %v381
      %392 = vst [vmem:[#allocation2 + $0x18] sm:$0xf] %v382
      %393 = vrot.lane.b32.xlu0 %v316, 1
      %v394 = vpop.permute.xlu0 %393
      %396 = vrot.lane.b32.xlu0 %v279, 1
      %v397 = vpop.permute.xlu0 %396
      %v398 = vsel %vm356, %v397, %v394
      %v401 = vsel %vm356, %v394, %v397
      %402 = vrot.lane.b32.xlu0 %v279, 127
      %v403 = vpop.permute.xlu0 %402
      %404 = vrot.lane.b32.xlu0 %v316, 127
      %v405 = vpop.permute.xlu0 %404
      %v406 = vsel %vm365, %v403, %v405
      %v410 = vsel %vm365, %v405, %v403
      %v411 = vsel %vm373, %v406, %v401
      %v412 = vsel %vm374, %v410, %v398
      %v413 = vsel %vm379, %v401, %v406
      %v414 = vsel %vm380, %v398, %v410
      %v417 = vrot.slane %v411, 4
      %v418 = vrot.slane %v412, 4
      %421 = vst [vmem:[#allocation2 + $0x10] sm:$0xf0] %v417
      %422 = vst [vmem:[#allocation2 + $0x18] sm:$0xf0] %v418
      %424 = vst [vmem:[#allocation2 + $0x20] sm:$0xf] %v279
      %425 = vst [vmem:[#allocation2 + $0x28] sm:$0xf] %v316
      %v428 = vrot.slane %v413, 4
      %v429 = vrot.slane %v414, 4
      %432 = vst [vmem:[#allocation2 + $0x20] sm:$0xf0] %v428
      %433 = vst [vmem:[#allocation2 + $0x28] sm:$0xf0] %v429
      %435 = vrot.lane.b32.xlu0 %v348, 1
      %v436 = vpop.permute.xlu0 %435
      %439 = vrot.lane.b32.xlu0 %v347, 1
      %v440 = vpop.permute.xlu0 %439
      %v441 = vsel %vm356, %v440, %v436
      %v444 = vsel %vm356, %v436, %v440
      %445 = vrot.lane.b32.xlu0 %v347, 127
      %v446 = vpop.permute.xlu0 %445
      %447 = vrot.lane.b32.xlu0 %v348, 127
      %v448 = vpop.permute.xlu0 %447
      %v449 = vsel %vm365, %v446, %v448
      %v453 = vsel %vm365, %v448, %v446
      %v454 = vsel %vm373, %v449, %v444
      %v455 = vsel %vm374, %v453, %v441
      %v456 = vsel %vm379, %v444, %v449
      %v457 = vsel %vm380, %v441, %v453
      %458 = vst [vmem:[#allocation2 + $0x30] sm:$0xf] %v454
      %459 = vst [vmem:[#allocation2 + $0x38] sm:$0xf] %v455
      %v460 = vrot.slane %v347, 4
      %v461 = vrot.slane %v348, 4
      %464 = vst [vmem:[#allocation2 + $0x30] sm:$0xf0] %v460
      %465 = vst [vmem:[#allocation2 + $0x38] sm:$0xf0] %v461
      %466 = vst [vmem:[#allocation2 + $0x40] sm:$0xf] %v456
      %467 = vst [vmem:[#allocation2 + $0x48] sm:$0xf] %v457
      %v468 = vld [vmem:[%s1] sm:$0xf]
      %v469 = vld [vmem:[#allocation2] sm:$0xff]
      %v470 = vld [vmem:[#allocation2 + $0x8] sm:$0xff]
      %v471 = vld [vmem:[#allocation2 + $0x10] sm:$0xff]
      %v472 = vld [vmem:[#allocation2 + $0x18] sm:$0xff]
      %v473 = vld [vmem:[#allocation2 + $0x20] sm:$0xff]
      %v474 = vld [vmem:[#allocation2 + $0x28] sm:$0xff]
      %v475 = vld [vmem:[#allocation2 + $0x30] sm:$0xff]
      %v476 = vld [vmem:[#allocation2 + $0x38] sm:$0xff]
      %v477 = vld [vmem:[#allocation2 + $0x40] sm:$0xf]
      %v478 = vld [vmem:[#allocation2 + $0x48] sm:$0xf]
      %vm479 = vcmask 293888
      %v481 = vsel %vm479, %v468, 0
      %vm483 = vcmask 1043456
      %v485 = vsel %vm483, %v477, 0
      %v488 = vsel %vm483, %v478, 0
      %490 = vmatprep.subr.mxu0 0.0
      %491 = vmatpush1.msra.mxu0 0.0
      %492 = vmatprep.subr.mxu0 0.0
      %493 = vmatpush1.msra.mxu0 0.0
      %494 = vmatprep.subr.mxu0 0.0
      %495 = vmatpush1.msra.mxu0 0.0
      %496 = vmatprep.subr.mxu0 0.0
      %497 = vmatpush1.msra.mxu0 0.0
      %498 = vmatprep.subr.mxu0 0.0
      %499 = vmatpush1.msra.mxu0 0.0
      %500 = vmatprep.subr.mxu0 0.0
      %501 = vmatpush1.msra.mxu0 0.0
      %502 = vmatprep.subr.mxu0 0.0
      %503 = vmatpush1.msra.mxu0 0.0
      %504 = vmatprep.subr.mxu0 0.0
      %505 = vmatpush1.msra.mxu0 0.0
      %506 = vmatprep.subr.mxu0 0.0
      %507 = vmatpush1.msra.mxu0 0.0
      %508 = vmatprep.subr.mxu0 0.0
      %509 = vmatpush1.msra.mxu0 0.0
      %510 = vmatprep.subr.mxu0 0.0
      %511 = vmatpush1.msra.mxu0 0.0
      %v512 = vand.u32 %v488, 4294901760
      %513 = vmatprep.subr.mxu0 %v512
      %v514 = vand.u32 %v485, 4294901760
      %515 = vmatpush1.msra.mxu0 %v514
      %v516 = vand.u32 %v476, 4294901760
      %517 = vmatprep.subr.mxu0 %v516
      %v518 = vand.u32 %v475, 4294901760
      %519 = vmatpush1.msra.mxu0 %v518
      %v520 = vand.u32 %v474, 4294901760
      %521 = vmatprep.subr.mxu0 %v520
      %v522 = vand.u32 %v473, 4294901760
      %523 = vmatpush1.msra.mxu0 %v522
      %v524 = vand.u32 %v472, 4294901760
      %525 = vmatprep.subr.mxu0 %v524
      %v526 = vand.u32 %v471, 4294901760
      %527 = vmatpush1.msra.mxu0 %v526
      %v528 = vand.u32 %v470, 4294901760
      %529 = vmatprep.subr.mxu0 %v528
      %v530 = vand.u32 %v469, 4294901760
      %531 = vmatpush1.msra.mxu0 %v530
      %532 = vmatprep.subr.mxu0 0.0
      %533 = vmatpush2.msra.mxu0 0.0
      %534 = vmatprep.subr.mxu0 0.0
      %535 = vmatpush2.msra.mxu0 0.0
      %536 = vmatprep.subr.mxu0 0.0
      %537 = vmatpush2.msra.mxu0 0.0
      %538 = vmatprep.subr.mxu0 0.0
      %539 = vmatpush2.msra.mxu0 0.0
      %540 = vmatprep.subr.mxu0 0.0
      %541 = vmatpush2.msra.mxu0 0.0
      %542 = vmatprep.subr.mxu0 0.0
      %543 = vmatpush2.msra.mxu0 0.0
      %544 = vmatprep.subr.mxu0 0.0
      %545 = vmatpush2.msra.mxu0 0.0
      %546 = vmatprep.subr.mxu0 0.0
      %547 = vmatpush2.msra.mxu0 0.0
      %548 = vmatprep.subr.mxu0 0.0
      %549 = vmatpush2.msra.mxu0 0.0
      %550 = vmatprep.subr.mxu0 0.0
      %551 = vmatpush2.msra.mxu0 0.0
      %552 = vmatprep.subr.mxu0 0.0
      %553 = vmatpush2.msra.mxu0 0.0
      %554 = vmatprep.subr.mxu0 0.0
      %555 = vmatpush2.msra.mxu0 0.0
      %556 = vmatprep.subr.mxu0 0.0
      %557 = vmatpush2.msra.mxu0 0.0
      %558 = vmatprep.subr.mxu0 0.0
      %559 = vmatpush2.msra.mxu0 0.0
      %560 = vmatprep.subr.mxu0 0.0
      %561 = vmatpush2.msra.mxu0 0.0
      %562 = vmatprep.subr.mxu0 0.0
      %563 = vmatpush2.msra.mxu0 0.0
      %564 = vmatprep.mubr.f32.mxu0 0.0
      %v565 = vand.u32 %v481, 4294901760
      %v566 = vsub.f32 %v481, %v565
      %v567 = vand.u32 %v566, 4294901760
      %v568 = vsub.f32 %v566, %v567
      %v569 = vand.u32 %v568, 4294901760
      %570 = vmatmul.mubr.f32.gmra.mxu0 %v569
      %v571 = vpop.f32.mrf.mxu0
      %v572 = vadd.f32 0.0, %v571
      %v573 = vpop.f32.mrf.mxu0
      %v574 = vadd.f32 0.0, %v573
      %575 = vdwg.mxu0
      %576 = vmatprep.subr.mxu0 0.0
      %577 = vmatpush1.msra.mxu0 0.0
      %578 = vmatprep.subr.mxu0 0.0
      %579 = vmatpush1.msra.mxu0 0.0
      %580 = vmatprep.subr.mxu0 0.0
      %581 = vmatpush1.msra.mxu0 0.0
      %582 = vmatprep.subr.mxu0 0.0
      %583 = vmatpush1.msra.mxu0 0.0
      %584 = vmatprep.subr.mxu0 0.0
      %585 = vmatpush1.msra.mxu0 0.0
      %586 = vmatprep.subr.mxu0 0.0
      %587 = vmatpush1.msra.mxu0 0.0
      %588 = vmatprep.subr.mxu0 0.0
      %589 = vmatpush1.msra.mxu0 0.0
      %590 = vmatprep.subr.mxu0 0.0
      %591 = vmatpush1.msra.mxu0 0.0
      %592 = vmatprep.subr.mxu0 0.0
      %593 = vmatpush1.msra.mxu0 0.0
      %594 = vmatprep.subr.mxu0 0.0
      %595 = vmatpush1.msra.mxu0 0.0
      %596 = vmatprep.subr.mxu0 0.0
      %597 = vmatpush1.msra.mxu0 0.0
      %v598 = vand.u32 %v488, 4294901760
      %v599 = vsub.f32 %v488, %v598
      %v600 = vand.u32 %v599, 4294901760
      %v601 = vsub.f32 %v599, %v600
      %v602 = vand.u32 %v601, 4294901760
      %603 = vmatprep.subr.mxu0 %v602
      %v604 = vand.u32 %v485, 4294901760
      %v605 = vsub.f32 %v485, %v604
      %v606 = vand.u32 %v605, 4294901760
      %v607 = vsub.f32 %v605, %v606
      %v608 = vand.u32 %v607, 4294901760
      %609 = vmatpush1.msra.mxu0 %v608
      %v610 = vand.u32 %v476, 4294901760
      %v611 = vsub.f32 %v476, %v610
      %v612 = vand.u32 %v611, 4294901760
      %v613 = vsub.f32 %v611, %v612
      %v614 = vand.u32 %v613, 4294901760
      %615 = vmatprep.subr.mxu0 %v614
      %v616 = vand.u32 %v475, 4294901760
      %v617 = vsub.f32 %v475, %v616
      %v618 = vand.u32 %v617, 4294901760
      %v619 = vsub.f32 %v617, %v618
      %v620 = vand.u32 %v619, 4294901760
      %621 = vmatpush1.msra.mxu0 %v620
      %v622 = vand.u32 %v474, 4294901760
      %v623 = vsub.f32 %v474, %v622
      %v624 = vand.u32 %v623, 4294901760
      %v625 = vsub.f32 %v623, %v624
      %v626 = vand.u32 %v625, 4294901760
      %627 = vmatprep.subr.mxu0 %v626
      %v628 = vand.u32 %v473, 4294901760
      %v629 = vsub.f32 %v473, %v628
      %v630 = vand.u32 %v629, 4294901760
      %v631 = vsub.f32 %v629, %v630
      %v632 = vand.u32 %v631, 4294901760
      %633 = vmatpush1.msra.mxu0 %v632
      %v634 = vand.u32 %v472, 4294901760
      %v635 = vsub.f32 %v472, %v634
      %v636 = vand.u32 %v635, 4294901760
      %v637 = vsub.f32 %v635, %v636
      %v638 = vand.u32 %v637, 4294901760
      %639 = vmatprep.subr.mxu0 %v638
      %v640 = vand.u32 %v471, 4294901760
      %v641 = vsub.f32 %v471, %v640
      %v642 = vand.u32 %v641, 4294901760
      %v643 = vsub.f32 %v641, %v642
      %v644 = vand.u32 %v643, 4294901760
      %645 = vmatpush1.msra.mxu0 %v644
      %v646 = vand.u32 %v470, 4294901760
      %v647 = vsub.f32 %v470, %v646
      %v648 = vand.u32 %v647, 4294901760
      %v649 = vsub.f32 %v647, %v648
      %v650 = vand.u32 %v649, 4294901760
      %651 = vmatprep.subr.mxu0 %v650
      %v652 = vand.u32 %v469, 4294901760
      %v653 = vsub.f32 %v469, %v652
      %v654 = vand.u32 %v653, 4294901760
      %v655 = vsub.f32 %v653, %v654
      %v656 = vand.u32 %v655, 4294901760
      %657 = vmatpush1.msra.mxu0 %v656
      %658 = vmatprep.subr.mxu0 0.0
      %659 = vmatpush2.msra.mxu0 0.0
      %660 = vmatprep.subr.mxu0 0.0
      %661 = vmatpush2.msra.mxu0 0.0
      %662 = vmatprep.subr.mxu0 0.0
      %663 = vmatpush2.msra.mxu0 0.0
      %664 = vmatprep.subr.mxu0 0.0
      %665 = vmatpush2.msra.mxu0 0.0
      %666 = vmatprep.subr.mxu0 0.0
      %667 = vmatpush2.msra.mxu0 0.0
      %668 = vmatprep.subr.mxu0 0.0
      %669 = vmatpush2.msra.mxu0 0.0
      %670 = vmatprep.subr.mxu0 0.0
      %671 = vmatpush2.msra.mxu0 0.0
      %672 = vmatprep.subr.mxu0 0.0
      %673 = vmatpush2.msra.mxu0 0.0
      %674 = vmatprep.subr.mxu0 0.0
      %675 = vmatpush2.msra.mxu0 0.0
      %676 = vmatprep.subr.mxu0 0.0
      %677 = vmatpush2.msra.mxu0 0.0
      %678 = vmatprep.subr.mxu0 0.0
      %679 = vmatpush2.msra.mxu0 0.0
      %680 = vmatprep.subr.mxu0 0.0
      %681 = vmatpush2.msra.mxu0 0.0
      %682 = vmatprep.subr.mxu0 0.0
      %683 = vmatpush2.msra.mxu0 0.0
      %684 = vmatprep.subr.mxu0 0.0
      %685 = vmatpush2.msra.mxu0 0.0
      %686 = vmatprep.subr.mxu0 0.0
      %687 = vmatpush2.msra.mxu0 0.0
      %688 = vmatprep.subr.mxu0 0.0
      %689 = vmatpush2.msra.mxu0 0.0
      %690 = vmatprep.mubr.f32.mxu0 0.0
      %v691 = vand.u32 %v481, 4294901760
      %692 = vmatmul.mubr.f32.gmra.mxu0 %v691
      %v693 = vpop.f32.mrf.mxu0
      %v694 = vadd.f32 %v572, %v693
      %v695 = vpop.f32.mrf.mxu0
      %v696 = vadd.f32 %v574, %v695
      %697 = vdwg.mxu0
      %698 = vmatprep.subr.mxu0 0.0
      %699 = vmatpush1.msra.mxu0 0.0
      %700 = vmatprep.subr.mxu0 0.0
      %701 = vmatpush1.msra.mxu0 0.0
      %702 = vmatprep.subr.mxu0 0.0
      %703 = vmatpush1.msra.mxu0 0.0
      %704 = vmatprep.subr.mxu0 0.0
      %705 = vmatpush1.msra.mxu0 0.0
      %706 = vmatprep.subr.mxu0 0.0
      %707 = vmatpush1.msra.mxu0 0.0
      %708 = vmatprep.subr.mxu0 0.0
      %709 = vmatpush1.msra.mxu0 0.0
      %710 = vmatprep.subr.mxu0 0.0
      %711 = vmatpush1.msra.mxu0 0.0
      %712 = vmatprep.subr.mxu0 0.0
      %713 = vmatpush1.msra.mxu0 0.0
      %714 = vmatprep.subr.mxu0 0.0
      %715 = vmatpush1.msra.mxu0 0.0
      %716 = vmatprep.subr.mxu0 0.0
      %717 = vmatpush1.msra.mxu0 0.0
      %718 = vmatprep.subr.mxu0 0.0
      %719 = vmatpush1.msra.mxu0 0.0
      %v720 = vand.u32 %v488, 4294901760
      %v721 = vsub.f32 %v488, %v720
      %722 = vmatprep.subr.mxu0 %v721
      %v723 = vand.u32 %v485, 4294901760
      %v724 = vsub.f32 %v485, %v723
      %725 = vmatpush1.msra.mxu0 %v724
      %v726 = vand.u32 %v476, 4294901760
      %v727 = vsub.f32 %v476, %v726
      %728 = vmatprep.subr.mxu0 %v727
      %v729 = vand.u32 %v475, 4294901760
      %v730 = vsub.f32 %v475, %v729
      %731 = vmatpush1.msra.mxu0 %v730
      %v732 = vand.u32 %v474, 4294901760
      %v733 = vsub.f32 %v474, %v732
      %734 = vmatprep.subr.mxu0 %v733
      %v735 = vand.u32 %v473, 4294901760
      %v736 = vsub.f32 %v473, %v735
      %737 = vmatpush1.msra.mxu0 %v736
      %v738 = vand.u32 %v472, 4294901760
      %v739 = vsub.f32 %v472, %v738
      %740 = vmatprep.subr.mxu0 %v739
      %v741 = vand.u32 %v471, 4294901760
      %v742 = vsub.f32 %v471, %v741
      %743 = vmatpush1.msra.mxu0 %v742
      %v744 = vand.u32 %v470, 4294901760
      %v745 = vsub.f32 %v470, %v744
      %746 = vmatprep.subr.mxu0 %v745
      %v747 = vand.u32 %v469, 4294901760
      %v748 = vsub.f32 %v469, %v747
      %749 = vmatpush1.msra.mxu0 %v748
      %750 = vmatprep.subr.mxu0 0.0
      %751 = vmatpush2.msra.mxu0 0.0
      %752 = vmatprep.subr.mxu0 0.0
      %753 = vmatpush2.msra.mxu0 0.0
      %754 = vmatprep.subr.mxu0 0.0
      %755 = vmatpush2.msra.mxu0 0.0
      %756 = vmatprep.subr.mxu0 0.0
      %757 = vmatpush2.msra.mxu0 0.0
      %758 = vmatprep.subr.mxu0 0.0
      %759 = vmatpush2.msra.mxu0 0.0
      %760 = vmatprep.subr.mxu0 0.0
      %761 = vmatpush2.msra.mxu0 0.0
      %762 = vmatprep.subr.mxu0 0.0
      %763 = vmatpush2.msra.mxu0 0.0
      %764 = vmatprep.subr.mxu0 0.0
      %765 = vmatpush2.msra.mxu0 0.0
      %766 = vmatprep.subr.mxu0 0.0
      %767 = vmatpush2.msra.mxu0 0.0
      %768 = vmatprep.subr.mxu0 0.0
      %769 = vmatpush2.msra.mxu0 0.0
      %770 = vmatprep.subr.mxu0 0.0
      %771 = vmatpush2.msra.mxu0 0.0
      %772 = vmatprep.subr.mxu0 0.0
      %773 = vmatpush2.msra.mxu0 0.0
      %774 = vmatprep.subr.mxu0 0.0
      %775 = vmatpush2.msra.mxu0 0.0
      %776 = vmatprep.subr.mxu0 0.0
      %777 = vmatpush2.msra.mxu0 0.0
      %778 = vmatprep.subr.mxu0 0.0
      %779 = vmatpush2.msra.mxu0 0.0
      %780 = vmatprep.subr.mxu0 0.0
      %781 = vmatpush2.msra.mxu0 0.0
      %782 = vmatprep.mubr.f32.mxu0 0.0
      %v783 = vand.u32 %v481, 4294901760
      %v784 = vsub.f32 %v481, %v783
      %785 = vmatmul.mubr.f32.gmra.mxu0 %v784
      %v786 = vpop.f32.mrf.mxu0
      %v787 = vadd.f32 %v694, %v786
      %v788 = vpop.f32.mrf.mxu0
      %v789 = vadd.f32 %v696, %v788
      %790 = vdwg.mxu0
      %791 = vmatprep.subr.mxu0 0.0
      %792 = vmatpush1.msra.mxu0 0.0
      %793 = vmatprep.subr.mxu0 0.0
      %794 = vmatpush1.msra.mxu0 0.0
      %795 = vmatprep.subr.mxu0 0.0
      %796 = vmatpush1.msra.mxu0 0.0
      %797 = vmatprep.subr.mxu0 0.0
      %798 = vmatpush1.msra.mxu0 0.0
      %799 = vmatprep.subr.mxu0 0.0
      %800 = vmatpush1.msra.mxu0 0.0
      %801 = vmatprep.subr.mxu0 0.0
      %802 = vmatpush1.msra.mxu0 0.0
      %803 = vmatprep.subr.mxu0 0.0
      %804 = vmatpush1.msra.mxu0 0.0
      %805 = vmatprep.subr.mxu0 0.0
      %806 = vmatpush1.msra.mxu0 0.0
      %807 = vmatprep.subr.mxu0 0.0
      %808 = vmatpush1.msra.mxu0 0.0
      %809 = vmatprep.subr.mxu0 0.0
      %810 = vmatpush1.msra.mxu0 0.0
      %811 = vmatprep.subr.mxu0 0.0
      %812 = vmatpush1.msra.mxu0 0.0
      %v813 = vand.u32 %v488, 4294901760
      %814 = vmatprep.subr.mxu0 %v813
      %v815 = vand.u32 %v485, 4294901760
      %816 = vmatpush1.msra.mxu0 %v815
      %v817 = vand.u32 %v476, 4294901760
      %818 = vmatprep.subr.mxu0 %v817
      %v819 = vand.u32 %v475, 4294901760
      %820 = vmatpush1.msra.mxu0 %v819
      %v821 = vand.u32 %v474, 4294901760
      %822 = vmatprep.subr.mxu0 %v821
      %v823 = vand.u32 %v473, 4294901760
      %824 = vmatpush1.msra.mxu0 %v823
      %v825 = vand.u32 %v472, 4294901760
      %826 = vmatprep.subr.mxu0 %v825
      %v827 = vand.u32 %v471, 4294901760
      %828 = vmatpush1.msra.mxu0 %v827
      %v829 = vand.u32 %v470, 4294901760
      %830 = vmatprep.subr.mxu0 %v829
      %v831 = vand.u32 %v469, 4294901760
      %832 = vmatpush1.msra.mxu0 %v831
      %833 = vmatprep.subr.mxu0 0.0
      %834 = vmatpush2.msra.mxu0 0.0
      %835 = vmatprep.subr.mxu0 0.0
      %836 = vmatpush2.msra.mxu0 0.0
      %837 = vmatprep.subr.mxu0 0.0
      %838 = vmatpush2.msra.mxu0 0.0
      %839 = vmatprep.subr.mxu0 0.0
      %840 = vmatpush2.msra.mxu0 0.0
      %841 = vmatprep.subr.mxu0 0.0
      %842 = vmatpush2.msra.mxu0 0.0
      %843 = vmatprep.subr.mxu0 0.0
      %844 = vmatpush2.msra.mxu0 0.0
      %845 = vmatprep.subr.mxu0 0.0
      %846 = vmatpush2.msra.mxu0 0.0
      %847 = vmatprep.subr.mxu0 0.0
      %848 = vmatpush2.msra.mxu0 0.0
      %849 = vmatprep.subr.mxu0 0.0
      %850 = vmatpush2.msra.mxu0 0.0
      %851 = vmatprep.subr.mxu0 0.0
      %852 = vmatpush2.msra.mxu0 0.0
      %853 = vmatprep.subr.mxu0 0.0
      %854 = vmatpush2.msra.mxu0 0.0
      %855 = vmatprep.subr.mxu0 0.0
      %856 = vmatpush2.msra.mxu0 0.0
      %857 = vmatprep.subr.mxu0 0.0
      %858 = vmatpush2.msra.mxu0 0.0
      %859 = vmatprep.subr.mxu0 0.0
      %860 = vmatpush2.msra.mxu0 0.0
      %861 = vmatprep.subr.mxu0 0.0
      %862 = vmatpush2.msra.mxu0 0.0
      %863 = vmatprep.subr.mxu0 0.0
      %864 = vmatpush2.msra.mxu0 0.0
      %865 = vmatprep.mubr.f32.mxu0 0.0
      %v866 = vand.u32 %v481, 4294901760
      %v867 = vsub.f32 %v481, %v866
      %v868 = vand.u32 %v867, 4294901760
      %869 = vmatmul.mubr.f32.gmra.mxu0 %v868
      %v870 = vpop.f32.mrf.mxu0
      %v871 = vadd.f32 %v787, %v870
      %v872 = vpop.f32.mrf.mxu0
      %v873 = vadd.f32 %v789, %v872
      %874 = vdwg.mxu0
      %875 = vmatprep.subr.mxu0 0.0
      %876 = vmatpush1.msra.mxu0 0.0
      %877 = vmatprep.subr.mxu0 0.0
      %878 = vmatpush1.msra.mxu0 0.0
      %879 = vmatprep.subr.mxu0 0.0
      %880 = vmatpush1.msra.mxu0 0.0
      %881 = vmatprep.subr.mxu0 0.0
      %882 = vmatpush1.msra.mxu0 0.0
      %883 = vmatprep.subr.mxu0 0.0
      %884 = vmatpush1.msra.mxu0 0.0
      %885 = vmatprep.subr.mxu0 0.0
      %886 = vmatpush1.msra.mxu0 0.0
      %887 = vmatprep.subr.mxu0 0.0
      %888 = vmatpush1.msra.mxu0 0.0
      %889 = vmatprep.subr.mxu0 0.0
      %890 = vmatpush1.msra.mxu0 0.0
      %891 = vmatprep.subr.mxu0 0.0
      %892 = vmatpush1.msra.mxu0 0.0
      %893 = vmatprep.subr.mxu0 0.0
      %894 = vmatpush1.msra.mxu0 0.0
      %895 = vmatprep.subr.mxu0 0.0
      %896 = vmatpush1.msra.mxu0 0.0
      %v897 = vand.u32 %v488, 4294901760
      %v898 = vsub.f32 %v488, %v897
      %v899 = vand.u32 %v898, 4294901760
      %900 = vmatprep.subr.mxu0 %v899
      %v901 = vand.u32 %v485, 4294901760
      %v902 = vsub.f32 %v485, %v901
      %v903 = vand.u32 %v902, 4294901760
      %904 = vmatpush1.msra.mxu0 %v903
      %v905 = vand.u32 %v476, 4294901760
      %v906 = vsub.f32 %v476, %v905
      %v907 = vand.u32 %v906, 4294901760
      %908 = vmatprep.subr.mxu0 %v907
      %v909 = vand.u32 %v475, 4294901760
      %v910 = vsub.f32 %v475, %v909
      %v911 = vand.u32 %v910, 4294901760
      %912 = vmatpush1.msra.mxu0 %v911
      %v913 = vand.u32 %v474, 4294901760
      %v914 = vsub.f32 %v474, %v913
      %v915 = vand.u32 %v914, 4294901760
      %916 = vmatprep.subr.mxu0 %v915
      %v917 = vand.u32 %v473, 4294901760
      %v918 = vsub.f32 %v473, %v917
      %v919 = vand.u32 %v918, 4294901760
      %920 = vmatpush1.msra.mxu0 %v919
      %v921 = vand.u32 %v472, 4294901760
      %v922 = vsub.f32 %v472, %v921
      %v923 = vand.u32 %v922, 4294901760
      %924 = vmatprep.subr.mxu0 %v923
      %v925 = vand.u32 %v471, 4294901760
      %v926 = vsub.f32 %v471, %v925
      %v927 = vand.u32 %v926, 4294901760
      %928 = vmatpush1.msra.mxu0 %v927
      %v929 = vand.u32 %v470, 4294901760
      %v930 = vsub.f32 %v470, %v929
      %v931 = vand.u32 %v930, 4294901760
      %932 = vmatprep.subr.mxu0 %v931
      %v933 = vand.u32 %v469, 4294901760
      %v934 = vsub.f32 %v469, %v933
      %v935 = vand.u32 %v934, 4294901760
      %936 = vmatpush1.msra.mxu0 %v935
      %937 = vmatprep.subr.mxu0 0.0
      %938 = vmatpush2.msra.mxu0 0.0
      %939 = vmatprep.subr.mxu0 0.0
      %940 = vmatpush2.msra.mxu0 0.0
      %941 = vmatprep.subr.mxu0 0.0
      %942 = vmatpush2.msra.mxu0 0.0
      %943 = vmatprep.subr.mxu0 0.0
      %944 = vmatpush2.msra.mxu0 0.0
      %945 = vmatprep.subr.mxu0 0.0
      %946 = vmatpush2.msra.mxu0 0.0
      %947 = vmatprep.subr.mxu0 0.0
      %948 = vmatpush2.msra.mxu0 0.0
      %949 = vmatprep.subr.mxu0 0.0
      %950 = vmatpush2.msra.mxu0 0.0
      %951 = vmatprep.subr.mxu0 0.0
      %952 = vmatpush2.msra.mxu0 0.0
      %953 = vmatprep.subr.mxu0 0.0
      %954 = vmatpush2.msra.mxu0 0.0
      %955 = vmatprep.subr.mxu0 0.0
      %956 = vmatpush2.msra.mxu0 0.0
      %957 = vmatprep.subr.mxu0 0.0
      %958 = vmatpush2.msra.mxu0 0.0
      %959 = vmatprep.subr.mxu0 0.0
      %960 = vmatpush2.msra.mxu0 0.0
      %961 = vmatprep.subr.mxu0 0.0
      %962 = vmatpush2.msra.mxu0 0.0
      %963 = vmatprep.subr.mxu0 0.0
      %964 = vmatpush2.msra.mxu0 0.0
      %965 = vmatprep.subr.mxu0 0.0
      %966 = vmatpush2.msra.mxu0 0.0
      %967 = vmatprep.subr.mxu0 0.0
      %968 = vmatpush2.msra.mxu0 0.0
      %969 = vmatprep.mubr.f32.mxu0 0.0
      %v970 = vand.u32 %v481, 4294901760
      %971 = vmatmul.mubr.f32.gmra.mxu0 %v970
      %v972 = vpop.f32.mrf.mxu0
      %v973 = vadd.f32 %v871, %v972
      %v974 = vpop.f32.mrf.mxu0
      %v975 = vadd.f32 %v873, %v974
      %976 = vdwg.mxu0
      %977 = vmatprep.subr.mxu0 0.0
      %978 = vmatpush1.msra.mxu0 0.0
      %979 = vmatprep.subr.mxu0 0.0
      %980 = vmatpush1.msra.mxu0 0.0
      %981 = vmatprep.subr.mxu0 0.0
      %982 = vmatpush1.msra.mxu0 0.0
      %983 = vmatprep.subr.mxu0 0.0
      %984 = vmatpush1.msra.mxu0 0.0
      %985 = vmatprep.subr.mxu0 0.0
      %986 = vmatpush1.msra.mxu0 0.0
      %987 = vmatprep.subr.mxu0 0.0
      %988 = vmatpush1.msra.mxu0 0.0
      %989 = vmatprep.subr.mxu0 0.0
      %990 = vmatpush1.msra.mxu0 0.0
      %991 = vmatprep.subr.mxu0 0.0
      %992 = vmatpush1.msra.mxu0 0.0
      %993 = vmatprep.subr.mxu0 0.0
      %994 = vmatpush1.msra.mxu0 0.0
      %995 = vmatprep.subr.mxu0 0.0
      %996 = vmatpush1.msra.mxu0 0.0
      %997 = vmatprep.subr.mxu0 0.0
      %998 = vmatpush1.msra.mxu0 0.0
      %v999 = vand.u32 %v488, 4294901760
      %1000 = vmatprep.subr.mxu0 %v999
      %v1001 = vand.u32 %v485, 4294901760
      %1002 = vmatpush1.msra.mxu0 %v1001
      %v1003 = vand.u32 %v476, 4294901760
      %1004 = vmatprep.subr.mxu0 %v1003
      %v1005 = vand.u32 %v475, 4294901760
      %1006 = vmatpush1.msra.mxu0 %v1005
      %v1007 = vand.u32 %v474, 4294901760
      %1008 = vmatprep.subr.mxu0 %v1007
      %v1009 = vand.u32 %v473, 4294901760
      %1010 = vmatpush1.msra.mxu0 %v1009
      %v1011 = vand.u32 %v472, 4294901760
      %1012 = vmatprep.subr.mxu0 %v1011
      %v1013 = vand.u32 %v471, 4294901760
      %1014 = vmatpush1.msra.mxu0 %v1013
      %v1015 = vand.u32 %v470, 4294901760
      %1016 = vmatprep.subr.mxu0 %v1015
      %v1017 = vand.u32 %v469, 4294901760
      %1018 = vmatpush1.msra.mxu0 %v1017
      %1019 = vmatprep.subr.mxu0 0.0
      %1020 = vmatpush2.msra.mxu0 0.0
      %1021 = vmatprep.subr.mxu0 0.0
      %1022 = vmatpush2.msra.mxu0 0.0
      %1023 = vmatprep.subr.mxu0 0.0
      %1024 = vmatpush2.msra.mxu0 0.0
      %1025 = vmatprep.subr.mxu0 0.0
      %1026 = vmatpush2.msra.mxu0 0.0
      %1027 = vmatprep.subr.mxu0 0.0
      %1028 = vmatpush2.msra.mxu0 0.0
      %1029 = vmatprep.subr.mxu0 0.0
      %1030 = vmatpush2.msra.mxu0 0.0
      %1031 = vmatprep.subr.mxu0 0.0
      %1032 = vmatpush2.msra.mxu0 0.0
      %1033 = vmatprep.subr.mxu0 0.0
      %1034 = vmatpush2.msra.mxu0 0.0
      %1035 = vmatprep.subr.mxu0 0.0
      %1036 = vmatpush2.msra.mxu0 0.0
      %1037 = vmatprep.subr.mxu0 0.0
      %1038 = vmatpush2.msra.mxu0 0.0
      %1039 = vmatprep.subr.mxu0 0.0
      %1040 = vmatpush2.msra.mxu0 0.0
      %1041 = vmatprep.subr.mxu0 0.0
      %1042 = vmatpush2.msra.mxu0 0.0
      %1043 = vmatprep.subr.mxu0 0.0
      %1044 = vmatpush2.msra.mxu0 0.0
      %1045 = vmatprep.subr.mxu0 0.0
      %1046 = vmatpush2.msra.mxu0 0.0
      %1047 = vmatprep.subr.mxu0 0.0
      %1048 = vmatpush2.msra.mxu0 0.0
      %1049 = vmatprep.subr.mxu0 0.0
      %1050 = vmatpush2.msra.mxu0 0.0
      %1051 = vmatprep.mubr.f32.mxu0 0.0
      %v1052 = vand.u32 %v481, 4294901760
      %1053 = vmatmul.mubr.f32.gmra.mxu0 %v1052
      %v1054 = vpop.f32.mrf.mxu0
      %v1055 = vadd.f32 %v973, %v1054
      %v1056 = vpop.f32.mrf.mxu0
      %v1057 = vadd.f32 %v975, %v1056
      %1058 = vdwg.mxu0
      %v1059 = vsel %vm483, %v1055, 0.0
      %v1060 = vsel %vm483, %v1057, 0.0
      %v1061 = vadd.f32 %v1059, %v1060
      %1062 = vadd.xlane.f32.xlu0 %v1061
      %v1063 = vpop.xlane.xlu0 %1062
      %v1064 = vmul.f32 %v1063, 0.00390625
      %v1065 = vmul.f32 %v1055, %v1055
      %v1066 = vmul.f32 %v1057, %v1057
      %v1067 = vsel %vm483, %v1065, 0.0
      %v1068 = vsel %vm483, %v1066, 0.0
      %v1069 = vadd.f32 %v1067, %v1068
      %1070 = vadd.xlane.f32.xlu0 %v1069
      %v1071 = vpop.xlane.xlu0 %1070
      %v1072 = vmul.f32 %v1071, 0.00390625
      %v1073 = vmul.f32 %v1064, %v1064
      %v1074 = vsub.f32 %v1072, %v1073
      %v1075 = vld [vmem:[%s2] sm:$0xf]
      %v1076 = vadd.f32 %v1074, 1e-05
      %v1077 = vrsqrt.pop %v1076
      %v1078 = vmul.f32 %v1075, %v1077
      %v1079 = vld [vmem:[%s3] sm:$0xf]
      %v1080 = vmul.f32 %v1064, %v1078
      %v1081 = vsub.f32 %v1079, %v1080
      %1083 = vset.pattern.permute.xlu0 0
      %1084 = vperm.xlu0 %1083, %v1078
      %v1085 = vpop.permute.xlu0 %1084
      %v1087 = vmul.f32 %v1055, %v1085
      %v1088 = vmul.f32 %v1057, %v1085
      %1090 = vset.pattern.permute.xlu0 0
      %1091 = vperm.xlu0 %1090, %v1081
      %v1092 = vpop.permute.xlu0 %1091
      %v1094 = vadd.f32 %v1087, %v1092
      %v1095 = vadd.f32 %v1088, %v1092
      %v1096 = vmax.f32 %v1094, 0.0
      %v1097 = vmax.f32 %v1095, 0.0
      %1099 = vrot.lane.b32.xlu0 %v1097, 16
      %v1100 = vpop.permute.xlu0 %1099
      %1103 = vrot.lane.b32.xlu0 %v1096, 16
      %v1104 = vpop.permute.xlu0 %1103
      %v1105 = vsel %vm322, %v1104, %v1100
      %v1108 = vsel %vm322, %v1100, %v1104
      %1109 = vrot.lane.b32.xlu0 %v1096, 112
      %v1110 = vpop.permute.xlu0 %1109
      %1111 = vrot.lane.b32.xlu0 %v1097, 112
      %v1112 = vpop.permute.xlu0 %1111
      %v1113 = vsel %vm331, %v1110, %v1112
      %v1117 = vsel %vm331, %v1112, %v1110
      %v1118 = vsel %vm339, %v1113, %v1108
      %v1119 = vsel %vm340, %v1117, %v1105
      %v1120 = vsel %vm345, %v1108, %v1113
      %v1121 = vsel %vm346, %v1105, %v1117
      %1123 = vrot.lane.b32.xlu0 %v1119, 1
      %v1124 = vpop.permute.xlu0 %1123
      %1127 = vrot.lane.b32.xlu0 %v1118, 1
      %v1128 = vpop.permute.xlu0 %1127
      %v1129 = vsel %vm356, %v1128, %v1124
      %v1132 = vsel %vm356, %v1124, %v1128
      %1133 = vrot.lane.b32.xlu0 %v1118, 127
      %v1134 = vpop.permute.xlu0 %1133
      %1135 = vrot.lane.b32.xlu0 %v1119, 127
      %v1136 = vpop.permute.xlu0 %1135
      %v1137 = vsel %vm365, %v1134, %v1136
      %v1141 = vsel %vm365, %v1136, %v1134
      %v1142 = vsel %vm373, %v1137, %v1132
      %v1143 = vsel %vm374, %v1141, %v1129
      %v1144 = vsel %vm379, %v1132, %v1137
      %v1145 = vsel %vm380, %v1129, %v1141
      %1146 = vst [vmem:[#allocation2] sm:$0xf] %v1142
      %1147 = vst [vmem:[#allocation2 + $0x8] sm:$0xf] %v1143
      %v1148 = vrot.slane %v1118, 4
      %v1149 = vrot.slane %v1119, 4
      %1152 = vst [vmem:[#allocation2] sm:$0xf0] %v1148
      %1153 = vst [vmem:[#allocation2 + $0x8] sm:$0xf0] %v1149
      %1154 = vst [vmem:[#allocation2 + $0x10] sm:$0xf] %v1144
      %1155 = vst [vmem:[#allocation2 + $0x18] sm:$0xf] %v1145
      %1156 = vrot.lane.b32.xlu0 %v1097, 1
      %v1157 = vpop.permute.xlu0 %1156
      %1159 = vrot.lane.b32.xlu0 %v1096, 1
      %v1160 = vpop.permute.xlu0 %1159
      %v1161 = vsel %vm356, %v1160, %v1157
      %v1164 = vsel %vm356, %v1157, %v1160
      %1165 = vrot.lane.b32.xlu0 %v1096, 127
      %v1166 = vpop.permute.xlu0 %1165
      %1167 = vrot.lane.b32.xlu0 %v1097, 127
      %v1168 = vpop.permute.xlu0 %1167
      %v1169 = vsel %vm365, %v1166, %v1168
      %v1173 = vsel %vm365, %v1168, %v1166
      %v1174 = vsel %vm373, %v1169, %v1164
      %v1175 = vsel %vm374, %v1173, %v1161
      %v1176 = vsel %vm379, %v1164, %v1169
      %v1177 = vsel %vm380, %v1161, %v1173
      %v1180 = vrot.slane %v1174, 4
      %v1181 = vrot.slane %v1175, 4
      %1184 = vst [vmem:[#allocation2 + $0x10] sm:$0xf0] %v1180
      %1185 = vst [vmem:[#allocation2 + $0x18] sm:$0xf0] %v1181
      %1186 = vst [vmem:[#allocation2 + $0x20] sm:$0xf] %v1096
      %1187 = vst [vmem:[#allocation2 + $0x28] sm:$0xf] %v1097
      %v1190 = vrot.slane %v1176, 4
      %v1191 = vrot.slane %v1177, 4
      %1194 = vst [vmem:[#allocation2 + $0x20] sm:$0xf0] %v1190
      %1195 = vst [vmem:[#allocation2 + $0x28] sm:$0xf0] %v1191
      %1197 = vrot.lane.b32.xlu0 %v1121, 1
      %v1198 = vpop.permute.xlu0 %1197
      %1201 = vrot.lane.b32.xlu0 %v1120, 1
      %v1202 = vpop.permute.xlu0 %1201
      %v1203 = vsel %vm356, %v1202, %v1198
      %v1206 = vsel %vm356, %v1198, %v1202
      %1207 = vrot.lane.b32.xlu0 %v1120, 127
      %v1208 = vpop.permute.xlu0 %1207
      %1209 = vrot.lane.b32.xlu0 %v1121, 127
      %v1210 = vpop.permute.xlu0 %1209
      %v1211 = vsel %vm365, %v1208, %v1210
      %v1215 = vsel %vm365, %v1210, %v1208
      %v1216 = vsel %vm373, %v1211, %v1206
      %v1217 = vsel %vm374, %v1215, %v1203
      %v1218 = vsel %vm379, %v1206, %v1211
      %v1219 = vsel %vm380, %v1203, %v1215
      %1220 = vst [vmem:[#allocation2 + $0x30] sm:$0xf] %v1216
      %1221 = vst [vmem:[#allocation2 + $0x38] sm:$0xf] %v1217
      %v1222 = vrot.slane %v1120, 4
      %v1223 = vrot.slane %v1121, 4
      %1226 = vst [vmem:[#allocation2 + $0x30] sm:$0xf0] %v1222
      %1227 = vst [vmem:[#allocation2 + $0x38] sm:$0xf0] %v1223
      %1228 = vst [vmem:[#allocation2 + $0x40] sm:$0xf] %v1218
      %1229 = vst [vmem:[#allocation2 + $0x48] sm:$0xf] %v1219
      %v1230 = vld [vmem:[%s4] sm:$0xf]
      %v1231 = vld [vmem:[#allocation2] sm:$0xff]
      %v1232 = vld [vmem:[#allocation2 + $0x8] sm:$0xff]
      %v1233 = vld [vmem:[#allocation2 + $0x10] sm:$0xff]
      %v1234 = vld [vmem:[#allocation2 + $0x18] sm:$0xff]
      %v1235 = vld [vmem:[#allocation2 + $0x20] sm:$0xff]
      %v1236 = vld [vmem:[#allocation2 + $0x28] sm:$0xff]
      %v1237 = vld [vmem:[#allocation2 + $0x30] sm:$0xff]
      %v1238 = vld [vmem:[#allocation2 + $0x38] sm:$0xff]
      %v1239 = vld [vmem:[#allocation2 + $0x40] sm:$0xf]
      %v1240 = vld [vmem:[#allocation2 + $0x48] sm:$0xf]
      %v1242 = vsel %vm479, %v1230, 0
      %v1245 = vsel %vm483, %v1239, 0
      %v1248 = vsel %vm483, %v1240, 0
      %1250 = vmatprep.subr.mxu0 0.0
      %1251 = vmatpush1.msra.mxu0 0.0
      %1252 = vmatprep.subr.mxu0 0.0
      %1253 = vmatpush1.msra.mxu0 0.0
      %1254 = vmatprep.subr.mxu0 0.0
      %1255 = vmatpush1.msra.mxu0 0.0
      %1256 = vmatprep.subr.mxu0 0.0
      %1257 = vmatpush1.msra.mxu0 0.0
      %1258 = vmatprep.subr.mxu0 0.0
      %1259 = vmatpush1.msra.mxu0 0.0
      %1260 = vmatprep.subr.mxu0 0.0
      %1261 = vmatpush1.msra.mxu0 0.0
      %1262 = vmatprep.subr.mxu0 0.0
      %1263 = vmatpush1.msra.mxu0 0.0
      %1264 = vmatprep.subr.mxu0 0.0
      %1265 = vmatpush1.msra.mxu0 0.0
      %1266 = vmatprep.subr.mxu0 0.0
      %1267 = vmatpush1.msra.mxu0 0.0
      %1268 = vmatprep.subr.mxu0 0.0
      %1269 = vmatpush1.msra.mxu0 0.0
      %1270 = vmatprep.subr.mxu0 0.0
      %1271 = vmatpush1.msra.mxu0 0.0
      %v1272 = vand.u32 %v1248, 4294901760
      %1273 = vmatprep.subr.mxu0 %v1272
      %v1274 = vand.u32 %v1245, 4294901760
      %1275 = vmatpush1.msra.mxu0 %v1274
      %v1276 = vand.u32 %v1238, 4294901760
      %1277 = vmatprep.subr.mxu0 %v1276
      %v1278 = vand.u32 %v1237, 4294901760
      %1279 = vmatpush1.msra.mxu0 %v1278
      %v1280 = vand.u32 %v1236, 4294901760
      %1281 = vmatprep.subr.mxu0 %v1280
      %v1282 = vand.u32 %v1235, 4294901760
      %1283 = vmatpush1.msra.mxu0 %v1282
      %v1284 = vand.u32 %v1234, 4294901760
      %1285 = vmatprep.subr.mxu0 %v1284
      %v1286 = vand.u32 %v1233, 4294901760
      %1287 = vmatpush1.msra.mxu0 %v1286
      %v1288 = vand.u32 %v1232, 4294901760
      %1289 = vmatprep.subr.mxu0 %v1288
      %v1290 = vand.u32 %v1231, 4294901760
      %1291 = vmatpush1.msra.mxu0 %v1290
      %1292 = vmatprep.subr.mxu0 0.0
      %1293 = vmatpush2.msra.mxu0 0.0
      %1294 = vmatprep.subr.mxu0 0.0
      %1295 = vmatpush2.msra.mxu0 0.0
      %1296 = vmatprep.subr.mxu0 0.0
      %1297 = vmatpush2.msra.mxu0 0.0
      %1298 = vmatprep.subr.mxu0 0.0
      %1299 = vmatpush2.msra.mxu0 0.0
      %1300 = vmatprep.subr.mxu0 0.0
      %1301 = vmatpush2.msra.mxu0 0.0
      %1302 = vmatprep.subr.mxu0 0.0
      %1303 = vmatpush2.msra.mxu0 0.0
      %1304 = vmatprep.subr.mxu0 0.0
      %1305 = vmatpush2.msra.mxu0 0.0
      %1306 = vmatprep.subr.mxu0 0.0
      %1307 = vmatpush2.msra.mxu0 0.0
      %1308 = vmatprep.subr.mxu0 0.0
      %1309 = vmatpush2.msra.mxu0 0.0
      %1310 = vmatprep.subr.mxu0 0.0
      %1311 = vmatpush2.msra.mxu0 0.0
      %1312 = vmatprep.subr.mxu0 0.0
      %1313 = vmatpush2.msra.mxu0 0.0
      %1314 = vmatprep.subr.mxu0 0.0
      %1315 = vmatpush2.msra.mxu0 0.0
      %1316 = vmatprep.subr.mxu0 0.0
      %1317 = vmatpush2.msra.mxu0 0.0
      %1318 = vmatprep.subr.mxu0 0.0
      %1319 = vmatpush2.msra.mxu0 0.0
      %1320 = vmatprep.subr.mxu0 0.0
      %1321 = vmatpush2.msra.mxu0 0.0
      %1322 = vmatprep.subr.mxu0 0.0
      %1323 = vmatpush2.msra.mxu0 0.0
      %1324 = vmatprep.mubr.f32.mxu0 0.0
      %v1325 = vand.u32 %v1242, 4294901760
      %v1326 = vsub.f32 %v1242, %v1325
      %v1327 = vand.u32 %v1326, 4294901760
      %v1328 = vsub.f32 %v1326, %v1327
      %v1329 = vand.u32 %v1328, 4294901760
      %1330 = vmatmul.mubr.f32.gmra.mxu0 %v1329
      %v1331 = vpop.f32.mrf.mxu0
      %v1332 = vadd.f32 0.0, %v1331
      %v1333 = vpop.f32.mrf.mxu0
      %v1334 = vadd.f32 0.0, %v1333
      %1335 = vdwg.mxu0
      %1336 = vmatprep.subr.mxu0 0.0
      %1337 = vmatpush1.msra.mxu0 0.0
      %1338 = vmatprep.subr.mxu0 0.0
      %1339 = vmatpush1.msra.mxu0 0.0
      %1340 = vmatprep.subr.mxu0 0.0
      %1341 = vmatpush1.msra.mxu0 0.0
      %1342 = vmatprep.subr.mxu0 0.0
      %1343 = vmatpush1.msra.mxu0 0.0
      %1344 = vmatprep.subr.mxu0 0.0
      %1345 = vmatpush1.msra.mxu0 0.0
      %1346 = vmatprep.subr.mxu0 0.0
      %1347 = vmatpush1.msra.mxu0 0.0
      %1348 = vmatprep.subr.mxu0 0.0
      %1349 = vmatpush1.msra.mxu0 0.0
      %1350 = vmatprep.subr.mxu0 0.0
      %1351 = vmatpush1.msra.mxu0 0.0
      %1352 = vmatprep.subr.mxu0 0.0
      %1353 = vmatpush1.msra.mxu0 0.0
      %1354 = vmatprep.subr.mxu0 0.0
      %1355 = vmatpush1.msra.mxu0 0.0
      %1356 = vmatprep.subr.mxu0 0.0
      %1357 = vmatpush1.msra.mxu0 0.0
      %v1358 = vand.u32 %v1248, 4294901760
      %v1359 = vsub.f32 %v1248, %v1358
      %v1360 = vand.u32 %v1359, 4294901760
      %v1361 = vsub.f32 %v1359, %v1360
      %v1362 = vand.u32 %v1361, 4294901760
      %1363 = vmatprep.subr.mxu0 %v1362
      %v1364 = vand.u32 %v1245, 4294901760
      %v1365 = vsub.f32 %v1245, %v1364
      %v1366 = vand.u32 %v1365, 4294901760
      %v1367 = vsub.f32 %v1365, %v1366
      %v1368 = vand.u32 %v1367, 4294901760
      %1369 = vmatpush1.msra.mxu0 %v1368
      %v1370 = vand.u32 %v1238, 4294901760
      %v1371 = vsub.f32 %v1238, %v1370
      %v1372 = vand.u32 %v1371, 4294901760
      %v1373 = vsub.f32 %v1371, %v1372
      %v1374 = vand.u32 %v1373, 4294901760
      %1375 = vmatprep.subr.mxu0 %v1374
      %v1376 = vand.u32 %v1237, 4294901760
      %v1377 = vsub.f32 %v1237, %v1376
      %v1378 = vand.u32 %v1377, 4294901760
      %v1379 = vsub.f32 %v1377, %v1378
      %v1380 = vand.u32 %v1379, 4294901760
      %1381 = vmatpush1.msra.mxu0 %v1380
      %v1382 = vand.u32 %v1236, 4294901760
      %v1383 = vsub.f32 %v1236, %v1382
      %v1384 = vand.u32 %v1383, 4294901760
      %v1385 = vsub.f32 %v1383, %v1384
      %v1386 = vand.u32 %v1385, 4294901760
      %1387 = vmatprep.subr.mxu0 %v1386
      %v1388 = vand.u32 %v1235, 4294901760
      %v1389 = vsub.f32 %v1235, %v1388
      %v1390 = vand.u32 %v1389, 4294901760
      %v1391 = vsub.f32 %v1389, %v1390
      %v1392 = vand.u32 %v1391, 4294901760
      %1393 = vmatpush1.msra.mxu0 %v1392
      %v1394 = vand.u32 %v1234, 4294901760
      %v1395 = vsub.f32 %v1234, %v1394
      %v1396 = vand.u32 %v1395, 4294901760
      %v1397 = vsub.f32 %v1395, %v1396
      %v1398 = vand.u32 %v1397, 4294901760
      %1399 = vmatprep.subr.mxu0 %v1398
      %v1400 = vand.u32 %v1233, 4294901760
      %v1401 = vsub.f32 %v1233, %v1400
      %v1402 = vand.u32 %v1401, 4294901760
      %v1403 = vsub.f32 %v1401, %v1402
      %v1404 = vand.u32 %v1403, 4294901760
      %1405 = vmatpush1.msra.mxu0 %v1404
      %v1406 = vand.u32 %v1232, 4294901760
      %v1407 = vsub.f32 %v1232, %v1406
      %v1408 = vand.u32 %v1407, 4294901760
      %v1409 = vsub.f32 %v1407, %v1408
      %v1410 = vand.u32 %v1409, 4294901760
      %1411 = vmatprep.subr.mxu0 %v1410
      %v1412 = vand.u32 %v1231, 4294901760
      %v1413 = vsub.f32 %v1231, %v1412
      %v1414 = vand.u32 %v1413, 4294901760
      %v1415 = vsub.f32 %v1413, %v1414
      %v1416 = vand.u32 %v1415, 4294901760
      %1417 = vmatpush1.msra.mxu0 %v1416
      %1418 = vmatprep.subr.mxu0 0.0
      %1419 = vmatpush2.msra.mxu0 0.0
      %1420 = vmatprep.subr.mxu0 0.0
      %1421 = vmatpush2.msra.mxu0 0.0
      %1422 = vmatprep.subr.mxu0 0.0
      %1423 = vmatpush2.msra.mxu0 0.0
      %1424 = vmatprep.subr.mxu0 0.0
      %1425 = vmatpush2.msra.mxu0 0.0
      %1426 = vmatprep.subr.mxu0 0.0
      %1427 = vmatpush2.msra.mxu0 0.0
      %1428 = vmatprep.subr.mxu0 0.0
      %1429 = vmatpush2.msra.mxu0 0.0
      %1430 = vmatprep.subr.mxu0 0.0
      %1431 = vmatpush2.msra.mxu0 0.0
      %1432 = vmatprep.subr.mxu0 0.0
      %1433 = vmatpush2.msra.mxu0 0.0
      %1434 = vmatprep.subr.mxu0 0.0
      %1435 = vmatpush2.msra.mxu0 0.0
      %1436 = vmatprep.subr.mxu0 0.0
      %1437 = vmatpush2.msra.mxu0 0.0
      %1438 = vmatprep.subr.mxu0 0.0
      %1439 = vmatpush2.msra.mxu0 0.0
      %1440 = vmatprep.subr.mxu0 0.0
      %1441 = vmatpush2.msra.mxu0 0.0
      %1442 = vmatprep.subr.mxu0 0.0
      %1443 = vmatpush2.msra.mxu0 0.0
      %1444 = vmatprep.subr.mxu0 0.0
      %1445 = vmatpush2.msra.mxu0 0.0
      %1446 = vmatprep.subr.mxu0 0.0
      %1447 = vmatpush2.msra.mxu0 0.0
      %1448 = vmatprep.subr.mxu0 0.0
      %1449 = vmatpush2.msra.mxu0 0.0
      %1450 = vmatprep.mubr.f32.mxu0 0.0
      %v1451 = vand.u32 %v1242, 4294901760
      %1452 = vmatmul.mubr.f32.gmra.mxu0 %v1451
      %v1453 = vpop.f32.mrf.mxu0
      %v1454 = vadd.f32 %v1332, %v1453
      %v1455 = vpop.f32.mrf.mxu0
      %v1456 = vadd.f32 %v1334, %v1455
      %1457 = vdwg.mxu0
      %1458 = vmatprep.subr.mxu0 0.0
      %1459 = vmatpush1.msra.mxu0 0.0
      %1460 = vmatprep.subr.mxu0 0.0
      %1461 = vmatpush1.msra.mxu0 0.0
      %1462 = vmatprep.subr.mxu0 0.0
      %1463 = vmatpush1.msra.mxu0 0.0
      %1464 = vmatprep.subr.mxu0 0.0
      %1465 = vmatpush1.msra.mxu0 0.0
      %1466 = vmatprep.subr.mxu0 0.0
      %1467 = vmatpush1.msra.mxu0 0.0
      %1468 = vmatprep.subr.mxu0 0.0
      %1469 = vmatpush1.msra.mxu0 0.0
      %1470 = vmatprep.subr.mxu0 0.0
      %1471 = vmatpush1.msra.mxu0 0.0
      %1472 = vmatprep.subr.mxu0 0.0
      %1473 = vmatpush1.msra.mxu0 0.0
      %1474 = vmatprep.subr.mxu0 0.0
      %1475 = vmatpush1.msra.mxu0 0.0
      %1476 = vmatprep.subr.mxu0 0.0
      %1477 = vmatpush1.msra.mxu0 0.0
      %1478 = vmatprep.subr.mxu0 0.0
      %1479 = vmatpush1.msra.mxu0 0.0
      %v1480 = vand.u32 %v1248, 4294901760
      %v1481 = vsub.f32 %v1248, %v1480
      %1482 = vmatprep.subr.mxu0 %v1481
      %v1483 = vand.u32 %v1245, 4294901760
      %v1484 = vsub.f32 %v1245, %v1483
      %1485 = vmatpush1.msra.mxu0 %v1484
      %v1486 = vand.u32 %v1238, 4294901760
      %v1487 = vsub.f32 %v1238, %v1486
      %1488 = vmatprep.subr.mxu0 %v1487
      %v1489 = vand.u32 %v1237, 4294901760
      %v1490 = vsub.f32 %v1237, %v1489
      %1491 = vmatpush1.msra.mxu0 %v1490
      %v1492 = vand.u32 %v1236, 4294901760
      %v1493 = vsub.f32 %v1236, %v1492
      %1494 = vmatprep.subr.mxu0 %v1493
      %v1495 = vand.u32 %v1235, 4294901760
      %v1496 = vsub.f32 %v1235, %v1495
      %1497 = vmatpush1.msra.mxu0 %v1496
      %v1498 = vand.u32 %v1234, 4294901760
      %v1499 = vsub.f32 %v1234, %v1498
      %1500 = vmatprep.subr.mxu0 %v1499
      %v1501 = vand.u32 %v1233, 4294901760
      %v1502 = vsub.f32 %v1233, %v1501
      %1503 = vmatpush1.msra.mxu0 %v1502
      %v1504 = vand.u32 %v1232, 4294901760
      %v1505 = vsub.f32 %v1232, %v1504
      %1506 = vmatprep.subr.mxu0 %v1505
      %v1507 = vand.u32 %v1231, 4294901760
      %v1508 = vsub.f32 %v1231, %v1507
      %1509 = vmatpush1.msra.mxu0 %v1508
      %1510 = vmatprep.subr.mxu0 0.0
      %1511 = vmatpush2.msra.mxu0 0.0
      %1512 = vmatprep.subr.mxu0 0.0
      %1513 = vmatpush2.msra.mxu0 0.0
      %1514 = vmatprep.subr.mxu0 0.0
      %1515 = vmatpush2.msra.mxu0 0.0
      %1516 = vmatprep.subr.mxu0 0.0
      %1517 = vmatpush2.msra.mxu0 0.0
      %1518 = vmatprep.subr.mxu0 0.0
      %1519 = vmatpush2.msra.mxu0 0.0
      %1520 = vmatprep.subr.mxu0 0.0
      %1521 = vmatpush2.msra.mxu0 0.0
      %1522 = vmatprep.subr.mxu0 0.0
      %1523 = vmatpush2.msra.mxu0 0.0
      %1524 = vmatprep.subr.mxu0 0.0
      %1525 = vmatpush2.msra.mxu0 0.0
      %1526 = vmatprep.subr.mxu0 0.0
      %1527 = vmatpush2.msra.mxu0 0.0
      %1528 = vmatprep.subr.mxu0 0.0
      %1529 = vmatpush2.msra.mxu0 0.0
      %1530 = vmatprep.subr.mxu0 0.0
      %1531 = vmatpush2.msra.mxu0 0.0
      %1532 = vmatprep.subr.mxu0 0.0
      %1533 = vmatpush2.msra.mxu0 0.0
      %1534 = vmatprep.subr.mxu0 0.0
      %1535 = vmatpush2.msra.mxu0 0.0
      %1536 = vmatprep.subr.mxu0 0.0
      %1537 = vmatpush2.msra.mxu0 0.0
      %1538 = vmatprep.subr.mxu0 0.0
      %1539 = vmatpush2.msra.mxu0 0.0
      %1540 = vmatprep.subr.mxu0 0.0
      %1541 = vmatpush2.msra.mxu0 0.0
      %1542 = vmatprep.mubr.f32.mxu0 0.0
      %v1543 = vand.u32 %v1242, 4294901760
      %v1544 = vsub.f32 %v1242, %v1543
      %1545 = vmatmul.mubr.f32.gmra.mxu0 %v1544
      %v1546 = vpop.f32.mrf.mxu0
      %v1547 = vadd.f32 %v1454, %v1546
      %v1548 = vpop.f32.mrf.mxu0
      %v1549 = vadd.f32 %v1456, %v1548
      %1550 = vdwg.mxu0
      %1551 = vmatprep.subr.mxu0 0.0
      %1552 = vmatpush1.msra.mxu0 0.0
      %1553 = vmatprep.subr.mxu0 0.0
      %1554 = vmatpush1.msra.mxu0 0.0
      %1555 = vmatprep.subr.mxu0 0.0
      %1556 = vmatpush1.msra.mxu0 0.0
      %1557 = vmatprep.subr.mxu0 0.0
      %1558 = vmatpush1.msra.mxu0 0.0
      %1559 = vmatprep.subr.mxu0 0.0
      %1560 = vmatpush1.msra.mxu0 0.0
      %1561 = vmatprep.subr.mxu0 0.0
      %1562 = vmatpush1.msra.mxu0 0.0
      %1563 = vmatprep.subr.mxu0 0.0
      %1564 = vmatpush1.msra.mxu0 0.0
      %1565 = vmatprep.subr.mxu0 0.0
      %1566 = vmatpush1.msra.mxu0 0.0
      %1567 = vmatprep.subr.mxu0 0.0
      %1568 = vmatpush1.msra.mxu0 0.0
      %1569 = vmatprep.subr.mxu0 0.0
      %1570 = vmatpush1.msra.mxu0 0.0
      %1571 = vmatprep.subr.mxu0 0.0
      %1572 = vmatpush1.msra.mxu0 0.0
      %v1573 = vand.u32 %v1248, 4294901760
      %1574 = vmatprep.subr.mxu0 %v1573
      %v1575 = vand.u32 %v1245, 4294901760
      %1576 = vmatpush1.msra.mxu0 %v1575
      %v1577 = vand.u32 %v1238, 4294901760
      %1578 = vmatprep.subr.mxu0 %v1577
      %v1579 = vand.u32 %v1237, 4294901760
      %1580 = vmatpush1.msra.mxu0 %v1579
      %v1581 = vand.u32 %v1236, 4294901760
      %1582 = vmatprep.subr.mxu0 %v1581
      %v1583 = vand.u32 %v1235, 4294901760
      %1584 = vmatpush1.msra.mxu0 %v1583
      %v1585 = vand.u32 %v1234, 4294901760
      %1586 = vmatprep.subr.mxu0 %v1585
      %v1587 = vand.u32 %v1233, 4294901760
      %1588 = vmatpush1.msra.mxu0 %v1587
      %v1589 = vand.u32 %v1232, 4294901760
      %1590 = vmatprep.subr.mxu0 %v1589
      %v1591 = vand.u32 %v1231, 4294901760
      %1592 = vmatpush1.msra.mxu0 %v1591
      %1593 = vmatprep.subr.mxu0 0.0
      %1594 = vmatpush2.msra.mxu0 0.0
      %1595 = vmatprep.subr.mxu0 0.0
      %1596 = vmatpush2.msra.mxu0 0.0
      %1597 = vmatprep.subr.mxu0 0.0
      %1598 = vmatpush2.msra.mxu0 0.0
      %1599 = vmatprep.subr.mxu0 0.0
      %1600 = vmatpush2.msra.mxu0 0.0
      %1601 = vmatprep.subr.mxu0 0.0
      %1602 = vmatpush2.msra.mxu0 0.0
      %1603 = vmatprep.subr.mxu0 0.0
      %1604 = vmatpush2.msra.mxu0 0.0
      %1605 = vmatprep.subr.mxu0 0.0
      %1606 = vmatpush2.msra.mxu0 0.0
      %1607 = vmatprep.subr.mxu0 0.0
      %1608 = vmatpush2.msra.mxu0 0.0
      %1609 = vmatprep.subr.mxu0 0.0
      %1610 = vmatpush2.msra.mxu0 0.0
      %1611 = vmatprep.subr.mxu0 0.0
      %1612 = vmatpush2.msra.mxu0 0.0
      %1613 = vmatprep.subr.mxu0 0.0
      %1614 = vmatpush2.msra.mxu0 0.0
      %1615 = vmatprep.subr.mxu0 0.0
      %1616 = vmatpush2.msra.mxu0 0.0
      %1617 = vmatprep.subr.mxu0 0.0
      %1618 = vmatpush2.msra.mxu0 0.0
      %1619 = vmatprep.subr.mxu0 0.0
      %1620 = vmatpush2.msra.mxu0 0.0
      %1621 = vmatprep.subr.mxu0 0.0
      %1622 = vmatpush2.msra.mxu0 0.0
      %1623 = vmatprep.subr.mxu0 0.0
      %1624 = vmatpush2.msra.mxu0 0.0
      %1625 = vmatprep.mubr.f32.mxu0 0.0
      %v1626 = vand.u32 %v1242, 4294901760
      %v1627 = vsub.f32 %v1242, %v1626
      %v1628 = vand.u32 %v1627, 4294901760
      %1629 = vmatmul.mubr.f32.gmra.mxu0 %v1628
      %v1630 = vpop.f32.mrf.mxu0
      %v1631 = vadd.f32 %v1547, %v1630
      %v1632 = vpop.f32.mrf.mxu0
      %v1633 = vadd.f32 %v1549, %v1632
      %1634 = vdwg.mxu0
      %1635 = vmatprep.subr.mxu0 0.0
      %1636 = vmatpush1.msra.mxu0 0.0
      %1637 = vmatprep.subr.mxu0 0.0
      %1638 = vmatpush1.msra.mxu0 0.0
      %1639 = vmatprep.subr.mxu0 0.0
      %1640 = vmatpush1.msra.mxu0 0.0
      %1641 = vmatprep.subr.mxu0 0.0
      %1642 = vmatpush1.msra.mxu0 0.0
      %1643 = vmatprep.subr.mxu0 0.0
      %1644 = vmatpush1.msra.mxu0 0.0
      %1645 = vmatprep.subr.mxu0 0.0
      %1646 = vmatpush1.msra.mxu0 0.0
      %1647 = vmatprep.subr.mxu0 0.0
      %1648 = vmatpush1.msra.mxu0 0.0
      %1649 = vmatprep.subr.mxu0 0.0
      %1650 = vmatpush1.msra.mxu0 0.0
      %1651 = vmatprep.subr.mxu0 0.0
      %1652 = vmatpush1.msra.mxu0 0.0
      %1653 = vmatprep.subr.mxu0 0.0
      %1654 = vmatpush1.msra.mxu0 0.0
      %1655 = vmatprep.subr.mxu0 0.0
      %1656 = vmatpush1.msra.mxu0 0.0
      %v1657 = vand.u32 %v1248, 4294901760
      %v1658 = vsub.f32 %v1248, %v1657
      %v1659 = vand.u32 %v1658, 4294901760
      %1660 = vmatprep.subr.mxu0 %v1659
      %v1661 = vand.u32 %v1245, 4294901760
      %v1662 = vsub.f32 %v1245, %v1661
      %v1663 = vand.u32 %v1662, 4294901760
      %1664 = vmatpush1.msra.mxu0 %v1663
      %v1665 = vand.u32 %v1238, 4294901760
      %v1666 = vsub.f32 %v1238, %v1665
      %v1667 = vand.u32 %v1666, 4294901760
      %1668 = vmatprep.subr.mxu0 %v1667
      %v1669 = vand.u32 %v1237, 4294901760
      %v1670 = vsub.f32 %v1237, %v1669
      %v1671 = vand.u32 %v1670, 4294901760
      %1672 = vmatpush1.msra.mxu0 %v1671
      %v1673 = vand.u32 %v1236, 4294901760
      %v1674 = vsub.f32 %v1236, %v1673
      %v1675 = vand.u32 %v1674, 4294901760
      %1676 = vmatprep.subr.mxu0 %v1675
      %v1677 = vand.u32 %v1235, 4294901760
      %v1678 = vsub.f32 %v1235, %v1677
      %v1679 = vand.u32 %v1678, 4294901760
      %1680 = vmatpush1.msra.mxu0 %v1679
      %v1681 = vand.u32 %v1234, 4294901760
      %v1682 = vsub.f32 %v1234, %v1681
      %v1683 = vand.u32 %v1682, 4294901760
      %1684 = vmatprep.subr.mxu0 %v1683
      %v1685 = vand.u32 %v1233, 4294901760
      %v1686 = vsub.f32 %v1233, %v1685
      %v1687 = vand.u32 %v1686, 4294901760
      %1688 = vmatpush1.msra.mxu0 %v1687
      %v1689 = vand.u32 %v1232, 4294901760
      %v1690 = vsub.f32 %v1232, %v1689
      %v1691 = vand.u32 %v1690, 4294901760
      %1692 = vmatprep.subr.mxu0 %v1691
      %v1693 = vand.u32 %v1231, 4294901760
      %v1694 = vsub.f32 %v1231, %v1693
      %v1695 = vand.u32 %v1694, 4294901760
      %1696 = vmatpush1.msra.mxu0 %v1695
      %1697 = vmatprep.subr.mxu0 0.0
      %1698 = vmatpush2.msra.mxu0 0.0
      %1699 = vmatprep.subr.mxu0 0.0
      %1700 = vmatpush2.msra.mxu0 0.0
      %1701 = vmatprep.subr.mxu0 0.0
      %1702 = vmatpush2.msra.mxu0 0.0
      %1703 = vmatprep.subr.mxu0 0.0
      %1704 = vmatpush2.msra.mxu0 0.0
      %1705 = vmatprep.subr.mxu0 0.0
      %1706 = vmatpush2.msra.mxu0 0.0
      %1707 = vmatprep.subr.mxu0 0.0
      %1708 = vmatpush2.msra.mxu0 0.0
      %1709 = vmatprep.subr.mxu0 0.0
      %1710 = vmatpush2.msra.mxu0 0.0
      %1711 = vmatprep.subr.mxu0 0.0
      %1712 = vmatpush2.msra.mxu0 0.0
      %1713 = vmatprep.subr.mxu0 0.0
      %1714 = vmatpush2.msra.mxu0 0.0
      %1715 = vmatprep.subr.mxu0 0.0
      %1716 = vmatpush2.msra.mxu0 0.0
      %1717 = vmatprep.subr.mxu0 0.0
      %1718 = vmatpush2.msra.mxu0 0.0
      %1719 = vmatprep.subr.mxu0 0.0
      %1720 = vmatpush2.msra.mxu0 0.0
      %1721 = vmatprep.subr.mxu0 0.0
      %1722 = vmatpush2.msra.mxu0 0.0
      %1723 = vmatprep.subr.mxu0 0.0
      %1724 = vmatpush2.msra.mxu0 0.0
      %1725 = vmatprep.subr.mxu0 0.0
      %1726 = vmatpush2.msra.mxu0 0.0
      %1727 = vmatprep.subr.mxu0 0.0
      %1728 = vmatpush2.msra.mxu0 0.0
      %1729 = vmatprep.mubr.f32.mxu0 0.0
      %v1730 = vand.u32 %v1242, 4294901760
      %1731 = vmatmul.mubr.f32.gmra.mxu0 %v1730
      %v1732 = vpop.f32.mrf.mxu0
      %v1733 = vadd.f32 %v1631, %v1732
      %v1734 = vpop.f32.mrf.mxu0
      %v1735 = vadd.f32 %v1633, %v1734
      %1736 = vdwg.mxu0
      %1737 = vmatprep.subr.mxu0 0.0
      %1738 = vmatpush1.msra.mxu0 0.0
      %1739 = vmatprep.subr.mxu0 0.0
      %1740 = vmatpush1.msra.mxu0 0.0
      %1741 = vmatprep.subr.mxu0 0.0
      %1742 = vmatpush1.msra.mxu0 0.0
      %1743 = vmatprep.subr.mxu0 0.0
      %1744 = vmatpush1.msra.mxu0 0.0
      %1745 = vmatprep.subr.mxu0 0.0
      %1746 = vmatpush1.msra.mxu0 0.0
      %1747 = vmatprep.subr.mxu0 0.0
      %1748 = vmatpush1.msra.mxu0 0.0
      %1749 = vmatprep.subr.mxu0 0.0
      %1750 = vmatpush1.msra.mxu0 0.0
      %1751 = vmatprep.subr.mxu0 0.0
      %1752 = vmatpush1.msra.mxu0 0.0
      %1753 = vmatprep.subr.mxu0 0.0
      %1754 = vmatpush1.msra.mxu0 0.0
      %1755 = vmatprep.subr.mxu0 0.0
      %1756 = vmatpush1.msra.mxu0 0.0
      %1757 = vmatprep.subr.mxu0 0.0
      %1758 = vmatpush1.msra.mxu0 0.0
      %v1759 = vand.u32 %v1248, 4294901760
      %1760 = vmatprep.subr.mxu0 %v1759
      %v1761 = vand.u32 %v1245, 4294901760
      %1762 = vmatpush1.msra.mxu0 %v1761
      %v1763 = vand.u32 %v1238, 4294901760
      %1764 = vmatprep.subr.mxu0 %v1763
      %v1765 = vand.u32 %v1237, 4294901760
      %1766 = vmatpush1.msra.mxu0 %v1765
      %v1767 = vand.u32 %v1236, 4294901760
      %1768 = vmatprep.subr.mxu0 %v1767
      %v1769 = vand.u32 %v1235, 4294901760
      %1770 = vmatpush1.msra.mxu0 %v1769
      %v1771 = vand.u32 %v1234, 4294901760
      %1772 = vmatprep.subr.mxu0 %v1771
      %v1773 = vand.u32 %v1233, 4294901760
      %1774 = vmatpush1.msra.mxu0 %v1773
      %v1775 = vand.u32 %v1232, 4294901760
      %1776 = vmatprep.subr.mxu0 %v1775
      %v1777 = vand.u32 %v1231, 4294901760
      %1778 = vmatpush1.msra.mxu0 %v1777
      %1779 = vmatprep.subr.mxu0 0.0
      %1780 = vmatpush2.msra.mxu0 0.0
      %1781 = vmatprep.subr.mxu0 0.0
      %1782 = vmatpush2.msra.mxu0 0.0
      %1783 = vmatprep.subr.mxu0 0.0
      %1784 = vmatpush2.msra.mxu0 0.0
      %1785 = vmatprep.subr.mxu0 0.0
      %1786 = vmatpush2.msra.mxu0 0.0
      %1787 = vmatprep.subr.mxu0 0.0
      %1788 = vmatpush2.msra.mxu0 0.0
      %1789 = vmatprep.subr.mxu0 0.0
      %1790 = vmatpush2.msra.mxu0 0.0
      %1791 = vmatprep.subr.mxu0 0.0
      %1792 = vmatpush2.msra.mxu0 0.0
      %1793 = vmatprep.subr.mxu0 0.0
      %1794 = vmatpush2.msra.mxu0 0.0
      %1795 = vmatprep.subr.mxu0 0.0
      %1796 = vmatpush2.msra.mxu0 0.0
      %1797 = vmatprep.subr.mxu0 0.0
      %1798 = vmatpush2.msra.mxu0 0.0
      %1799 = vmatprep.subr.mxu0 0.0
      %1800 = vmatpush2.msra.mxu0 0.0
      %1801 = vmatprep.subr.mxu0 0.0
      %1802 = vmatpush2.msra.mxu0 0.0
      %1803 = vmatprep.subr.mxu0 0.0
      %1804 = vmatpush2.msra.mxu0 0.0
      %1805 = vmatprep.subr.mxu0 0.0
      %1806 = vmatpush2.msra.mxu0 0.0
      %1807 = vmatprep.subr.mxu0 0.0
      %1808 = vmatpush2.msra.mxu0 0.0
      %1809 = vmatprep.subr.mxu0 0.0
      %1810 = vmatpush2.msra.mxu0 0.0
      %1811 = vmatprep.mubr.f32.mxu0 0.0
      %v1812 = vand.u32 %v1242, 4294901760
      %1813 = vmatmul.mubr.f32.gmra.mxu0 %v1812
      %v1814 = vpop.f32.mrf.mxu0
      %v1815 = vadd.f32 %v1733, %v1814
      %v1816 = vpop.f32.mrf.mxu0
      %v1817 = vadd.f32 %v1735, %v1816
      %1818 = vdwg.mxu0
      %v1819 = vsel %vm483, %v1815, 0.0
      %v1820 = vsel %vm483, %v1817, 0.0
      %v1821 = vadd.f32 %v1819, %v1820
      %1822 = vadd.xlane.f32.xlu0 %v1821
      %v1823 = vpop.xlane.xlu0 %1822
      %v1824 = vmul.f32 %v1823, 0.00390625
      %v1825 = vmul.f32 %v1815, %v1815
      %v1826 = vmul.f32 %v1817, %v1817
      %v1827 = vsel %vm483, %v1825, 0.0
      %v1828 = vsel %vm483, %v1826, 0.0
      %v1829 = vadd.f32 %v1827, %v1828
      %1830 = vadd.xlane.f32.xlu0 %v1829
      %v1831 = vpop.xlane.xlu0 %1830
      %v1832 = vmul.f32 %v1831, 0.00390625
      %v1833 = vmul.f32 %v1824, %v1824
      %v1834 = vsub.f32 %v1832, %v1833
      %v1835 = vld [vmem:[%s5] sm:$0xf]
      %v1836 = vadd.f32 %v1834, 1e-05
      %v1837 = vrsqrt.pop %v1836
      %v1838 = vmul.f32 %v1835, %v1837
      %v1839 = vld [vmem:[%s6] sm:$0xf]
      %v1840 = vmul.f32 %v1824, %v1838
      %v1841 = vsub.f32 %v1839, %v1840
      %1843 = vset.pattern.permute.xlu0 0
      %1844 = vperm.xlu0 %1843, %v1838
      %v1845 = vpop.permute.xlu0 %1844
      %v1847 = vmul.f32 %v1815, %v1845
      %v1848 = vmul.f32 %v1817, %v1845
      %1850 = vset.pattern.permute.xlu0 0
      %1851 = vperm.xlu0 %1850, %v1841
      %v1852 = vpop.permute.xlu0 %1851
      %v1854 = vadd.f32 %v1847, %v1852
      %v1855 = vadd.f32 %v1848, %v1852
      %v1856 = vadd.f32 %v1854, %v279
      %v1857 = vadd.f32 %v1855, %v316
      %v1858 = vmax.f32 %v1856, 0.0
      %v1859 = vmax.f32 %v1857, 0.0
      %v1862 = vcombine.low %v1858, %v1859
      %1864 = vst [vmem:[%s278] sm:$0xff] %v1862
      %p1865 = scmp.lt.s32.totalorder %s18, 1
      %s1866 = scalar_select %p1865, %s18, 1
      %s1867 = smul.addr %s1866, 2
      %s1868 = smul.addr %s1867, 4
      %s1869 = scalar_lea.vmem %s7, %s1868
      // Predicated region
      $region49: #{residual_block.1} parent=47 // pred_check
        %p1870 = pneg %p188
      $region50: #{residual_block.1} parent=47 // pred_check_branch
        %1872 = sbr.rel (%p1870) target = $region52
      $region51: #{residual_block.1} parent=47 // pred_region
        _
      $region52: #{residual_block.1} parent=47 // pred_fallthru
        _
    $region48: #{residual_block.1} parent=5 // pred_fallthru
      _
    %p1873 = scmp.le.s32.totalorder 2, %s13
    // Predicated region
    $region53: #{residual_block.1} parent=5 // pred_check
      %p1874 = pneg %p1873
    $region54: #{residual_block.1} parent=5 // pred_check_branch
      %1876 = sbr.rel (%p1874) target = $region56
    $region55: #{residual_block.1} parent=5 // pred_region
      %s1877 = ssub.s32 %s13, 2
      // Predicated region
      $region57: #{residual_block.1} parent=55 // pred_check
        %p1878 = pneg %p194
      $region58: #{residual_block.1} parent=55 // pred_check_branch
        %1880 = sbr.rel (%p1878) target = $region60
      $region59: #{residual_block.1} parent=55 // pred_region
        %p1881 = scmp.lt.s32.totalorder %s19, 1
        %s1882 = scalar_select %p1881, %s19, 1
        %s1883 = smul.addr %s1882, 2
        %s1884 = smul.addr %s1883, 4
        %s1885 = scalar_lea.vmem %s7, %s1884
      $region60: #{residual_block.1} parent=55 // pred_fallthru
        _
    $region56: #{residual_block.1} parent=5 // pred_fallthru
      _
  $region6: #{residual_block.1} parent=0 // loop_footer
    %s17 = sadd.s32 1, %s13
  $region7: #{residual_block.1} parent=0 // loop_footer_branch
    %12 = sbr.rel target = $region3
  $region8: #{residual_block.1} parent=0 // loop_exit
    _

</llo_original>
